<compile_context>
chip_gen: v7x
topology: tpu7x:2x2x1
jax: 0.10.0
libtpu: 0.0.40
codegen_flags: <defaults>
</compile_context>

<pallas_src>
import functools

import jax
import jax.numpy as jnp
import numpy as np
from jax.experimental import pallas as pl
from jax.experimental.pallas import tpu as pltpu


def _laplacian_kernel(f_ref, ft_ref, vt_ref, lxt_ref, acc_ref, *, fn_total):
    """One (batch, face-tile) grid step.

    f_ref  : (1, TF, 3) int32  face-vertex indices (faces on sublanes)
    ft_ref : (1, 3, TF) int32  same, transposed (faces on lanes)
    vt_ref : (1, 3, Vn) f32    vertices, transposed (vertices on lanes)
    lxt_ref: (1, 3, Vn) f32    output (Lap @ V)^T
    acc_ref: (4, Vn)    f32    scratch: rows 0..2 = ((L+L^T)@V)^T, row 3 = rowsum(L+L^T)
    """
    f32 = jnp.float32
    t = pl.program_id(1)

    @pl.when(t == 0)
    def _init():
        acc_ref[...] = jnp.zeros_like(acc_ref)

    f = f_ref[0]            # (TF, 3)
    ft = ft_ref[0]          # (3, TF)
    vt = vt_ref[0]          # (3, Vn)
    tf = f.shape[0]
    vn = vt.shape[1]

    # One-hot index matrices via iota-compares (pure VPU, no relayouts):
    #   ohT[j][u, face] = (F[face, j] == u)   -> B-operand of the gather matmul
    #   oh [j][face, u] = (F[face, j] == u)   -> B-operand of the scatter matmul
    sub_iota = jax.lax.broadcasted_iota(jnp.int32, (vn, tf), 0)
    lane_iota = jax.lax.broadcasted_iota(jnp.int32, (tf, vn), 1)
    ohT = [(sub_iota == ft[j:j + 1, :]).astype(f32) for j in range(3)]
    oh = [(lane_iota == f[:, j:j + 1]).astype(f32) for j in range(3)]

    # Gather per-face vertex positions, lane-dense (3, TF), on the MXU.
    v1t = jnp.dot(vt, ohT[0], preferred_element_type=f32)
    v2t = jnp.dot(vt, ohT[1], preferred_element_type=f32)
    v3t = jnp.dot(vt, ohT[2], preferred_element_type=f32)

    # Cotangent weights (same math as cotangent() in the spec), lane-dense (1, TF).
    def sqnorm(e):
        return jnp.sum(e * e, axis=0, keepdims=True)

    l1s, l2s, l3s = sqnorm(v2t - v3t), sqnorm(v3t - v1t), sqnorm(v1t - v2t)
    l1, l2, l3 = jnp.sqrt(l1s), jnp.sqrt(l2s), jnp.sqrt(l3s)
    sp = (l1 + l2 + l3) * 0.5
    area2 = 2.0 * jnp.sqrt(sp * (sp - l1) * (sp - l2) * (sp - l3))
    # NOTE: degenerate triangles (area ~ 0) yield inf/nan, matching the PyTorch reference.
    w0 = (l2s + l3s - l1s) / area2 * 0.25   # cot23
    w1 = (l1s + l3s - l2s) / area2 * 0.25   # cot31
    w2 = (l1s + l2s - l3s) / area2 * 0.25   # cot12

    if fn_total % tf != 0:
        # Zero the weights of padded faces (wrapper pads F with vertex index 0).
        lane = jax.lax.broadcasted_iota(jnp.int32, (1, tf), 1)
        valid = (t * tf + lane) < fn_total
        zero = jnp.zeros_like(w0)
        w0 = jnp.where(valid, w0, zero)
        w1 = jnp.where(valid, w1, zero)
        w2 = jnp.where(valid, w2, zero)

    # Direct application of (L + L^T) and its row-sum, grouped by face column.
    # L entries per face: (F1,F2,w0), (F2,F0,w1), (F0,F1,w2).
    # rows 0..2 = weighted neighbour coordinates, row 3 = diagonal (row-sum) weight.
    rhs0 = jnp.concatenate([w1 * v3t + w2 * v2t, w1 + w2], axis=0)   # scattered to F[:, 0]
    rhs1 = jnp.concatenate([w0 * v3t + w2 * v1t, w0 + w2], axis=0)   # scattered to F[:, 1]
    rhs2 = jnp.concatenate([w0 * v2t + w1 * v1t, w0 + w1], axis=0)   # scattered to F[:, 2]

    acc_ref[...] += (jnp.dot(rhs0, oh[0], preferred_element_type=f32) +
                     jnp.dot(rhs1, oh[1], preferred_element_type=f32) +
                     jnp.dot(rhs2, oh[2], preferred_element_type=f32))

    @pl.when(t == pl.num_programs(1) - 1)
    def _finalize():
        acc = acc_ref[...]
        sym = acc[0:3, :]          # ((L + L^T) @ V)^T
        diag = acc[3:4, :]         # rowsum(L + L^T)
        lxt_ref[0] = (diag * vt - sym).astype(lxt_ref.dtype)


def laplacian_forward(V, F, *, face_tile=256):
    """V: (B, Vn, 3) f32, F: (B, Fn, 3) int -> Lx: (B, Vn, 3) f32."""
    assert face_tile % 128 == 0, "face_tile must be a multiple of 128"
    V = V.astype(jnp.float32)
    F = F.astype(jnp.int32)
    B, Vn, _ = V.shape
    Fn = F.shape[1]

    num_ft = pl.cdiv(Fn, face_tile)
    fn_pad = num_ft * face_tile
    if fn_pad != Fn:
        F_pad = jnp.pad(F, ((0, 0), (0, fn_pad - Fn), (0, 0)))   # pad faces with vertex 0
    else:
        F_pad = F
    FT = jnp.swapaxes(F_pad, 1, 2)   # (B, 3, Fn_pad) — layout plumbing only
    VT = jnp.swapaxes(V, 1, 2)       # (B, 3, Vn)

    kernel = functools.partial(_laplacian_kernel, fn_total=Fn)

    lxt = pl.pallas_call(
        kernel,
        out_shape=jax.ShapeDtypeStruct((B, 3, Vn), jnp.float32),
        grid_spec=pltpu.PrefetchScalarGridSpec(
            num_scalar_prefetch=0,
            grid=(B, num_ft),                      # reduction (face) axis last
            in_specs=[
                pl.BlockSpec((1, face_tile, 3), lambda b, t: (b, t, 0)),
                pl.BlockSpec((1, 3, face_tile), lambda b, t: (b, 0, t)),
                pl.BlockSpec((1, 3, Vn), lambda b, t: (b, 0, 0)),
            ],
            out_specs=pl.BlockSpec((1, 3, Vn), lambda b, t: (b, 0, 0)),
            scratch_shapes=[pltpu.VMEM((4, Vn), jnp.float32)],
        ),
        compiler_params=pltpu.CompilerParams(
            dimension_semantics=("parallel", "arbitrary"),   # batch can split across TCs
            vmem_limit_bytes=48 * 1024 * 1024,               # safe on v5e/v6e/v7x
        ),
    )(F_pad, FT, VT)
    return jnp.swapaxes(lxt, 1, 2)   # (B, Vn, 3)


def _reference(V, F):
    """Pure-JAX replica of Laplacian.forward for validation."""
    B, Vn, _ = V.shape

    def gather(col):
        idx = jnp.repeat(F[:, :, col:col + 1], 3, axis=2)
        return jnp.take_along_axis(V, idx, axis=1)

    v1, v2, v3 = gather(0), gather(1), gather(2)
    l1 = jnp.sqrt(((v2 - v3) ** 2).sum(2))
    l2 = jnp.sqrt(((v3 - v1) ** 2).sum(2))
    l3 = jnp.sqrt(((v1 - v2) ** 2).sum(2))
    sp = (l1 + l2 + l3) * 0.5
    A = 2 * jnp.sqrt(sp * (sp - l1) * (sp - l2) * (sp - l3))
    C = jnp.stack([l2 ** 2 + l3 ** 2 - l1 ** 2,
                   l1 ** 2 + l3 ** 2 - l2 ** 2,
                   l1 ** 2 + l2 ** 2 - l3 ** 2], axis=2) / A[..., None] / 4
    rows = F[:, :, jnp.array([1, 2, 0])].reshape(B, -1)
    cols = F[:, :, jnp.array([2, 0, 1])].reshape(B, -1)
    vals = C.reshape(B, -1)
    b_idx = jnp.arange(B)[:, None]
    L = jnp.zeros((B, Vn, Vn), jnp.float32).at[b_idx, rows, cols].add(vals)
    L = L + jnp.swapaxes(L, 1, 2)
    diag = L.sum(-1)
    Lap = diag[:, :, None] * jnp.eye(Vn, dtype=jnp.float32)[None] - L
    return jnp.matmul(Lap, V, precision=jax.lax.Precision.HIGHEST)


if __name__ == "__main__":
    key = jax.random.PRNGKey(0)
    B, grid_n = 2, 16
    Vn = grid_n * grid_n                      # 256 vertices
    # Structured triangulated grid mesh (no degenerate faces), deterministic.
    faces = []
    for i in range(grid_n - 1):
        for j in range(grid_n - 1):
            a = i * grid_n + j
            b = (i + 1) * grid_n + j
            c = i * grid_n + (j + 1)
            d = (i + 1) * grid_n + (j + 1)
            faces.append([a, b, c])
            faces.append([b, d, c])
    F = jnp.asarray(np.stack([np.array(faces, np.int32)] * B), jnp.int32)   # (2, 450, 3)

    xs, ys = np.meshgrid(np.arange(grid_n, dtype=np.float32),
                         np.arange(grid_n, dtype=np.float32), indexing="ij")
    base = np.stack([xs.ravel(), ys.ravel(), np.zeros(Vn, np.float32)], axis=1)
    z = jax.random.normal(key, (B, Vn, 1), jnp.float32) * 0.1
    V = jnp.asarray(base)[None].repeat(B, axis=0)
    V = V.at[:, :, 2:3].add(z).astype(jnp.float32)                          # (2, 256, 3)

    Lx = jax.block_until_ready(laplacian_forward(V, F))
    ref = _reference(V, F)

    assert Lx.shape == (B, Vn, 3) and Lx.dtype == jnp.float32
    err = float(np.max(np.abs(np.asarray(Lx) - np.asarray(ref))))
    assert np.allclose(np.asarray(Lx), np.asarray(ref), atol=1e-4, rtol=1e-4), (
        "max abs err:", err)
    print("KERNEL_OK")
</pallas_src>

<mosaic_0001>
module attributes {stable_mosaic.version = 11 : i64} {
  func.func @_laplacian_kernel(%arg0: i32, %arg1: i32, %arg2: memref<1x256x3xi32, #tpu.memory_space<vmem>>, %arg3: memref<1x3x256xi32, #tpu.memory_space<vmem>>, %arg4: memref<1x3x256xf32, #tpu.memory_space<vmem>>, %arg5: memref<1x3x256xf32, #tpu.memory_space<vmem>>, %arg6: memref<4x256xf32, #tpu.memory_space<vmem>>) attributes {dimension_semantics = [#tpu.dimension_semantics<parallel>, #tpu.dimension_semantics<arbitrary>], iteration_bounds = array<i64: 2, 2>, scalar_prefetch = 0 : i64, scratch_operands = 1 : i64, tpu.core_type = #tpu.core_type<tc>, window_params = [{transform_indices = @transform_0, window_bounds = array<i64: 1, 256, 3>}, {transform_indices = @transform_1, window_bounds = array<i64: 1, 3, 256>}, {transform_indices = @transform_2, window_bounds = array<i64: 1, 3, 256>}, {transform_indices = @transform_3, window_bounds = array<i64: 1, 3, 256>}]} {
    %c0_i32 = arith.constant 0 : i32
    %0 = arith.cmpi eq, %arg1, %c0_i32 : i32
    %1 = arith.extui %0 : i1 to i32
    %c0_i32_0 = arith.constant 0 : i32
    %2 = arith.cmpi ne, %1, %c0_i32_0 : i32
    scf.if %2 {
      %cst_28 = arith.constant 0.000000e+00 : f32
      %129 = vector.broadcast %cst_28 : f32 to vector<4x256xf32>
      %c0_29 = arith.constant 0 : index
      %c0_30 = arith.constant 0 : index
      %130 = vector.load %arg6[%c0_29, %c0_30] : memref<4x256xf32, #tpu.memory_space<vmem>>, vector<4x256xf32>
      tpu.vector_store %arg6[%c0_29, %c0_30], %129 {strides = array<i32>} : memref<4x256xf32, #tpu.memory_space<vmem>>, vector<4x256xf32>,
    } else {
    }
    %c0 = arith.constant 0 : index
    %c0_1 = arith.constant 0 : index
    %c0_2 = arith.constant 0 : index
    %3 = vector.load %arg2[%c0, %c0_1, %c0_2] : memref<1x256x3xi32, #tpu.memory_space<vmem>>, vector<1x256x3xi32>
    %4 = vector.shape_cast %3 : vector<1x256x3xi32> to vector<256x3xi32>
    %c0_3 = arith.constant 0 : index
    %c0_4 = arith.constant 0 : index
    %c0_5 = arith.constant 0 : index
    %5 = vector.load %arg3[%c0_3, %c0_4, %c0_5] : memref<1x3x256xi32, #tpu.memory_space<vmem>>, vector<1x3x256xi32>
    %6 = vector.shape_cast %5 : vector<1x3x256xi32> to vector<3x256xi32>
    %c0_6 = arith.constant 0 : index
    %c0_7 = arith.constant 0 : index
    %c0_8 = arith.constant 0 : index
    %7 = vector.load %arg4[%c0_6, %c0_7, %c0_8] : memref<1x3x256xf32, #tpu.memory_space<vmem>>, vector<1x3x256xf32>
    %8 = vector.shape_cast %7 : vector<1x3x256xf32> to vector<3x256xf32>
    %9 = tpu.iota {dimensions = array<i32: 0>} : vector<256x256xi32>
    %10 = tpu.iota {dimensions = array<i32: 1>} : vector<256x256xi32>
    %11 = vector.extract_strided_slice %6 {offsets = [0, 0], sizes = [1, 256], strides = [1, 1]} : vector<3x256xi32> to vector<1x256xi32>
    %12 = vector.broadcast %11 : vector<1x256xi32> to vector<256x256xi32>
    %13 = arith.cmpi eq, %9, %12 : vector<256x256xi32>
    %14 = arith.extui %13 : vector<256x256xi1> to vector<256x256xi32>
    %15 = arith.sitofp %14 : vector<256x256xi32> to vector<256x256xf32>
    %16 = vector.extract_strided_slice %6 {offsets = [1, 0], sizes = [1, 256], strides = [1, 1]} : vector<3x256xi32> to vector<1x256xi32>
    %17 = vector.broadcast %16 : vector<1x256xi32> to vector<256x256xi32>
    %18 = arith.cmpi eq, %9, %17 : vector<256x256xi32>
    %19 = arith.extui %18 : vector<256x256xi1> to vector<256x256xi32>
    %20 = arith.sitofp %19 : vector<256x256xi32> to vector<256x256xf32>
    %21 = vector.extract_strided_slice %6 {offsets = [2, 0], sizes = [1, 256], strides = [1, 1]} : vector<3x256xi32> to vector<1x256xi32>
    %22 = vector.broadcast %21 : vector<1x256xi32> to vector<256x256xi32>
    %23 = arith.cmpi eq, %9, %22 : vector<256x256xi32>
    %24 = arith.extui %23 : vector<256x256xi1> to vector<256x256xi32>
    %25 = arith.sitofp %24 : vector<256x256xi32> to vector<256x256xf32>
    %26 = vector.extract_strided_slice %4 {offsets = [0, 0], sizes = [256, 1], strides = [1, 1]} : vector<256x3xi32> to vector<256x1xi32>
    %27 = vector.broadcast %26 : vector<256x1xi32> to vector<256x256xi32>
    %28 = arith.cmpi eq, %10, %27 : vector<256x256xi32>
    %29 = arith.extui %28 : vector<256x256xi1> to vector<256x256xi32>
    %30 = arith.sitofp %29 : vector<256x256xi32> to vector<256x256xf32>
    %31 = vector.extract_strided_slice %4 {offsets = [0, 1], sizes = [256, 1], strides = [1, 1]} : vector<256x3xi32> to vector<256x1xi32>
    %32 = vector.broadcast %31 : vector<256x1xi32> to vector<256x256xi32>
    %33 = arith.cmpi eq, %10, %32 : vector<256x256xi32>
    %34 = arith.extui %33 : vector<256x256xi1> to vector<256x256xi32>
    %35 = arith.sitofp %34 : vector<256x256xi32> to vector<256x256xf32>
    %36 = vector.extract_strided_slice %4 {offsets = [0, 2], sizes = [256, 1], strides = [1, 1]} : vector<256x3xi32> to vector<256x1xi32>
    %37 = vector.broadcast %36 : vector<256x1xi32> to vector<256x256xi32>
    %38 = arith.cmpi eq, %10, %37 : vector<256x256xi32>
    %39 = arith.extui %38 : vector<256x256xi1> to vector<256x256xi32>
    %40 = arith.sitofp %39 : vector<256x256xi32> to vector<256x256xf32>
    %cst = arith.constant dense<0.000000e+00> : vector<3x256xf32>
    %41 = tpu.matmul %8, %15, %cst {dimension_numbers = #tpu.dot_dimension_numbers<[1], [0], [0], [1], [0, 0, 1, 1], [], []>} : vector<3x256xf32>, vector<256x256xf32>, vector<3x256xf32> -> vector<3x256xf32>
    %cst_9 = arith.constant dense<0.000000e+00> : vector<3x256xf32>
    %42 = tpu.matmul %8, %20, %cst_9 {dimension_numbers = #tpu.dot_dimension_numbers<[1], [0], [0], [1], [0, 0, 1, 1], [], []>} : vector<3x256xf32>, vector<256x256xf32>, vector<3x256xf32> -> vector<3x256xf32>
    %cst_10 = arith.constant dense<0.000000e+00> : vector<3x256xf32>
    %43 = tpu.matmul %8, %25, %cst_10 {dimension_numbers = #tpu.dot_dimension_numbers<[1], [0], [0], [1], [0, 0, 1, 1], [], []>} : vector<3x256xf32>, vector<256x256xf32>, vector<3x256xf32> -> vector<3x256xf32>
    %44 = arith.subf %42, %43 : vector<3x256xf32>
    %45 = arith.mulf %44, %44 : vector<3x256xf32>
    %cst_11 = arith.constant dense<0.000000e+00> : vector<256xf32>
    %46 = vector.multi_reduction <add>, %45, %cst_11 [0] : vector<3x256xf32> to vector<256xf32>
    %47 = vector.shape_cast %46 : vector<256xf32> to vector<1x256xf32>
    %48 = arith.subf %43, %41 : vector<3x256xf32>
    %49 = arith.mulf %48, %48 : vector<3x256xf32>
    %cst_12 = arith.constant dense<0.000000e+00> : vector<256xf32>
    %50 = vector.multi_reduction <add>, %49, %cst_12 [0] : vector<3x256xf32> to vector<256xf32>
    %51 = vector.shape_cast %50 : vector<256xf32> to vector<1x256xf32>
    %52 = arith.subf %41, %42 : vector<3x256xf32>
    %53 = arith.mulf %52, %52 : vector<3x256xf32>
    %cst_13 = arith.constant dense<0.000000e+00> : vector<256xf32>
    %54 = vector.multi_reduction <add>, %53, %cst_13 [0] : vector<3x256xf32> to vector<256xf32>
    %55 = vector.shape_cast %54 : vector<256xf32> to vector<1x256xf32>
    %56 = math.sqrt %47 : vector<1x256xf32>
    %57 = math.sqrt %51 : vector<1x256xf32>
    %58 = math.sqrt %55 : vector<1x256xf32>
    %59 = arith.addf %56, %57 : vector<1x256xf32>
    %60 = arith.addf %59, %58 : vector<1x256xf32>
    %cst_14 = arith.constant 5.000000e-01 : f32
    %61 = vector.broadcast %cst_14 : f32 to vector<1x256xf32>
    %62 = arith.mulf %60, %61 : vector<1x256xf32>
    %63 = arith.subf %62, %56 : vector<1x256xf32>
    %64 = arith.mulf %62, %63 : vector<1x256xf32>
    %65 = arith.subf %62, %57 : vector<1x256xf32>
    %66 = arith.mulf %64, %65 : vector<1x256xf32>
    %67 = arith.subf %62, %58 : vector<1x256xf32>
    %68 = arith.mulf %66, %67 : vector<1x256xf32>
    %69 = math.sqrt %68 : vector<1x256xf32>
    %cst_15 = arith.constant 2.000000e+00 : f32
    %70 = vector.broadcast %cst_15 : f32 to vector<1x256xf32>
    %71 = arith.mulf %70, %69 : vector<1x256xf32>
    %72 = arith.addf %51, %55 : vector<1x256xf32>
    %73 = arith.subf %72, %47 : vector<1x256xf32>
    %74 = arith.divf %73, %71 : vector<1x256xf32>
    %cst_16 = arith.constant 2.500000e-01 : f32
    %75 = vector.broadcast %cst_16 : f32 to vector<1x256xf32>
    %76 = arith.mulf %74, %75 : vector<1x256xf32>
    %77 = arith.addf %47, %55 : vector<1x256xf32>
    %78 = arith.subf %77, %51 : vector<1x256xf32>
    %79 = arith.divf %78, %71 : vector<1x256xf32>
    %cst_17 = arith.constant 2.500000e-01 : f32
    %80 = vector.broadcast %cst_17 : f32 to vector<1x256xf32>
    %81 = arith.mulf %79, %80 : vector<1x256xf32>
    %82 = arith.addf %47, %51 : vector<1x256xf32>
    %83 = arith.subf %82, %55 : vector<1x256xf32>
    %84 = arith.divf %83, %71 : vector<1x256xf32>
    %cst_18 = arith.constant 2.500000e-01 : f32
    %85 = vector.broadcast %cst_18 : f32 to vector<1x256xf32>
    %86 = arith.mulf %84, %85 : vector<1x256xf32>
    %87 = tpu.iota {dimensions = array<i32: 1>} : vector<1x256xi32>
    %c256_i32 = arith.constant 256 : i32
    %88 = arith.muli %arg1, %c256_i32 : i32
    %89 = vector.broadcast %88 : i32 to vector<1x256xi32>
    %90 = arith.addi %89, %87 : vector<1x256xi32>
    %c450_i32 = arith.constant 450 : i32
    %91 = vector.broadcast %c450_i32 : i32 to vector<1x256xi32>
    %92 = arith.cmpi slt, %90, %91 : vector<1x256xi32>
    %cst_19 = arith.constant 0.000000e+00 : f32
    %93 = vector.broadcast %cst_19 : f32 to vector<1x256xf32>
    %94 = arith.select %92, %76, %93 : vector<1x256xi1>, vector<1x256xf32>
    %95 = arith.select %92, %81, %93 : vector<1x256xi1>, vector<1x256xf32>
    %96 = arith.select %92, %86, %93 : vector<1x256xi1>, vector<1x256xf32>
    %97 = vector.broadcast %95 : vector<1x256xf32> to vector<3x256xf32>
    %98 = arith.mulf %97, %43 : vector<3x256xf32>
    %99 = vector.broadcast %96 : vector<1x256xf32> to vector<3x256xf32>
    %100 = arith.mulf %99, %42 : vector<3x256xf32>
    %101 = arith.addf %98, %100 : vector<3x256xf32>
    %102 = arith.addf %95, %96 : vector<1x256xf32>
    %103 = tpu.concatenate %101, %102 in 0 : vector<3x256xf32>, vector<1x256xf32> -> vector<4x256xf32>
    %104 = vector.broadcast %94 : vector<1x256xf32> to vector<3x256xf32>
    %105 = arith.mulf %104, %43 : vector<3x256xf32>
    %106 = vector.broadcast %96 : vector<1x256xf32> to vector<3x256xf32>
    %107 = arith.mulf %106, %41 : vector<3x256xf32>
    %108 = arith.addf %105, %107 : vector<3x256xf32>
    %109 = arith.addf %94, %96 : vector<1x256xf32>
    %110 = tpu.concatenate %108, %109 in 0 : vector<3x256xf32>, vector<1x256xf32> -> vector<4x256xf32>
    %111 = vector.broadcast %94 : vector<1x256xf32> to vector<3x256xf32>
    %112 = arith.mulf %111, %42 : vector<3x256xf32>
    %113 = vector.broadcast %95 : vector<1x256xf32> to vector<3x256xf32>
    %114 = arith.mulf %113, %41 : vector<3x256xf32>
    %115 = arith.addf %112, %114 : vector<3x256xf32>
    %116 = arith.addf %94, %95 : vector<1x256xf32>
    %117 = tpu.concatenate %115, %116 in 0 : vector<3x256xf32>, vector<1x256xf32> -> vector<4x256xf32>
    %c0_20 = arith.constant 0 : index
    %c0_21 = arith.constant 0 : index
    %118 = vector.load %arg6[%c0_20, %c0_21] : memref<4x256xf32, #tpu.memory_space<vmem>>, vector<4x256xf32>
    %cst_22 = arith.constant dense<0.000000e+00> : vector<4x256xf32>
    %119 = tpu.matmul %103, %30, %cst_22 {dimension_numbers = #tpu.dot_dimension_numbers<[1], [0], [0], [1], [0, 0, 1, 1], [], []>} : vector<4x256xf32>, vector<256x256xf32>, vector<4x256xf32> -> vector<4x256xf32>
    %cst_23 = arith.constant dense<0.000000e+00> : vector<4x256xf32>
    %120 = tpu.matmul %110, %35, %cst_23 {dimension_numbers = #tpu.dot_dimension_numbers<[1], [0], [0], [1], [0, 0, 1, 1], [], []>} : vector<4x256xf32>, vector<256x256xf32>, vector<4x256xf32> -> vector<4x256xf32>
    %121 = arith.addf %119, %120 : vector<4x256xf32>
    %cst_24 = arith.constant dense<0.000000e+00> : vector<4x256xf32>
    %122 = tpu.matmul %117, %40, %cst_24 {dimension_numbers = #tpu.dot_dimension_numbers<[1], [0], [0], [1], [0, 0, 1, 1], [], []>} : vector<4x256xf32>, vector<256x256xf32>, vector<4x256xf32> -> vector<4x256xf32>
    %123 = arith.addf %121, %122 : vector<4x256xf32>
    %124 = arith.addf %118, %123 : vector<4x256xf32>
    %c0_25 = arith.constant 0 : index
    %c0_26 = arith.constant 0 : index
    %125 = vector.load %arg6[%c0_25, %c0_26] : memref<4x256xf32, #tpu.memory_space<vmem>>, vector<4x256xf32>
    tpu.vector_store %arg6[%c0_25, %c0_26], %124 {strides = array<i32>} : memref<4x256xf32, #tpu.memory_space<vmem>>, vector<4x256xf32>,
    %c1_i32 = arith.constant 1 : i32
    %126 = arith.cmpi eq, %arg1, %c1_i32 : i32
    %127 = arith.extui %126 : i1 to i32
    %c0_i32_27 = arith.constant 0 : i32
    %128 = arith.cmpi ne, %127, %c0_i32_27 : i32
    scf.if %128 {
      %c0_28 = arith.constant 0 : index
      %c0_29 = arith.constant 0 : index
      %129 = vector.load %arg6[%c0_28, %c0_29] : memref<4x256xf32, #tpu.memory_space<vmem>>, vector<4x256xf32>
      %130 = vector.extract_strided_slice %129 {offsets = [0, 0], sizes = [3, 256], strides = [1, 1]} : vector<4x256xf32> to vector<3x256xf32>
      %131 = vector.extract_strided_slice %129 {offsets = [3, 0], sizes = [1, 256], strides = [1, 1]} : vector<4x256xf32> to vector<1x256xf32>
      %132 = vector.broadcast %131 : vector<1x256xf32> to vector<3x256xf32>
      %133 = arith.mulf %132, %8 : vector<3x256xf32>
      %134 = arith.subf %133, %130 : vector<3x256xf32>
      %c0_30 = arith.constant 0 : index
      %c0_31 = arith.constant 0 : index
      %c0_32 = arith.constant 0 : index
      %135 = vector.load %arg5[%c0_30, %c0_31, %c0_32] : memref<1x3x256xf32, #tpu.memory_space<vmem>>, vector<1x3x256xf32>
      %136 = vector.shape_cast %135 : vector<1x3x256xf32> to vector<3x256xf32>
      %137 = vector.shape_cast %134 : vector<3x256xf32> to vector<1x3x256xf32>
      tpu.vector_store %arg5[%c0_30, %c0_31, %c0_32], %137 {strides = array<i32>} : memref<1x3x256xf32, #tpu.memory_space<vmem>>, vector<1x3x256xf32>,
    } else {
    }
    return
  }
  func.func @transform_0(%arg0: i32, %arg1: i32) -> (i32, i32, i32) {
    %c0_i32 = arith.constant 0 : i32
    %c0_i32_0 = arith.constant 0 : i32
    return %arg0, %arg1, %c0_i32 : i32, i32, i32
  }
  func.func @transform_1(%arg0: i32, %arg1: i32) -> (i32, i32, i32) {
    %c0_i32 = arith.constant 0 : i32
    %c0_i32_0 = arith.constant 0 : i32
    return %arg0, %c0_i32, %arg1 : i32, i32, i32
  }
  func.func @transform_2(%arg0: i32, %arg1: i32) -> (i32, i32, i32) {
    %c0_i32 = arith.constant 0 : i32
    %c0_i32_0 = arith.constant 0 : i32
    %c0_i32_1 = arith.constant 0 : i32
    return %arg0, %c0_i32, %c0_i32_0 : i32, i32, i32
  }
  func.func @transform_3(%arg0: i32, %arg1: i32) -> (i32, i32, i32) {
    %c0_i32 = arith.constant 0 : i32
    %c0_i32_0 = arith.constant 0 : i32
    %c0_i32_1 = arith.constant 0 : i32
    return %arg0, %c0_i32, %c0_i32_0 : i32, i32, i32
  }
}

</mosaic_0001>

<llo_original>
// kernel: tpu_custom_call.1
$region0: #{tpu_custom_call.1}
  #allocation0 [shape = 'u32[]', space=smem, size = 0x4, offset = 0x4, fixed_abs, tag = 'smem constant byte address 0x4 - core index']
  #allocation1 [shape = 'u32[144,128]{1,0:T(1,128)}', space=vmem, size = 0x12000, scoped, tag = 'internal scratch']
  #allocation2 [shape = 'f32[4,256]{1,0:T(4,128)}', space=vmem, size = 0x1000, scoped, tag = 'scratch operand']
  %s0 = inlined_call_operand.vmem [shape: s32[2,512,3], index: 0, kind: input, shape index: {}]
  %s1 = inlined_call_operand.vmem [shape: s32[2,3,512], index: 1, kind: input, shape index: {}]
  %s2 = inlined_call_operand.vmem [shape: f32[2,3,256], index: 2, kind: input, shape index: {}]
  %s3 = inlined_call_operand.vmem [shape: f32[2,3,256], index: 3, kind: output, shape index: {}]
  %s4 = sld [smem:[#allocation0]]
  $region53: #{tpu_custom_call.1} parent=0
    _
  %s6 = ssub.s32 1, %s4
  %s7 = scalar_select 0, %s6, %s4
  loop: start=0, step=1, limit=6
  $region2: #{tpu_custom_call.1} parent=0 // loop_pre_header
    _
  $region3: #{tpu_custom_call.1} parent=0 // loop_header
    %s9 = sphi 0, %s13
    %p10 = scmp.ge.s32.totalorder %s9, 6
    %s16 = sphi 0, %s28
    %s17 = sphi 0, %s24
    %s18 = sphi 0, %s16
    %s19 = sphi 0, %s17
    %s20 = sphi 0, %s18
    %s21 = sphi 0, %s19
    %s33 = sphi 0, %s35
    %s36 = sphi 0, %s33
    %s37 = sphi 0, %s36
    %s53 = sphi 0, %s37
    %s61 = sphi 0, %s63
    %s64 = sphi 0, %s61
    %s65 = sphi 0, %s64
    %s81 = sphi 0, %s65
    %s87 = sphi 0, %s89
    %s90 = sphi 0, %s87
    %s91 = sphi 0, %s90
    %s107 = sphi 0, %s91
    %s113 = sphi 0, %s115
    %s116 = sphi 0, %s113
    %s117 = sphi 0, %s116
    %s133 = sphi 0, %s117
  $region4: #{tpu_custom_call.1} parent=0 // loop_header_branch
    %12 = sbr.rel (%p10) target = $region8
  $region5: #{tpu_custom_call.1} parent=0 // loop_body
    %s14 = ssub.s32 %s9, 1
    %s15 = ssub.s32 %s9, 2
    %s22 = sadd.s32 1, %s17
    %p23 = scmp.ge.s32.totalorder %s22, 2
    %s24 = scalar_select %p23, 0, %s22
    %s25 = sadd.s32 1, %s16
    %s26 = scalar_select %p23, %s25, %s16
    %p27 = scmp.ge.s32.totalorder %s26, 2
    %s28 = scalar_select %p27, 0, %s26
    %s29 = ssub.s32 %s16, %s28
    %s30 = ssub.s32 %s17, %s24
    %s31 = sor.u32 %s29, %s30
    %p32 = scmp.eq.s32.totalorder %s31, 0
    %s34 = sadd.s32 %s33, 1
    %s35 = scalar_select %p32, %s33, %s34
    %p38 = pneg %p32
    %p39 = scmp.eq.s32.totalorder %s9, 3
    %p40 = por %p38, %p39
    %p41 = scmp.ne.s32.totalorder %s33, %s36
    %p42 = scmp.eq.s32.totalorder %s9, 0
    %p43 = por %p41, %p42
    %p44 = scmp.ne.s32.totalorder %s33, %s36
    %p45 = scmp.eq.s32.totalorder %s14, 3
    %p46 = por %p44, %p45
    %p47 = scmp.ne.s32.totalorder %s36, %s37
    %p48 = scmp.eq.s32.totalorder %s14, 0
    %p49 = por %p47, %p48
    %p50 = scmp.ne.s32.totalorder %s36, %s37
    %p51 = scmp.eq.s32.totalorder %s15, 3
    %p52 = por %p50, %p51
    %p54 = scmp.ne.s32.totalorder %s37, %s53
    %p55 = scmp.eq.s32.totalorder %s15, 0
    %p56 = por %p54, %p55
    %s57 = ssub.s32 %s16, %s28
    %s58 = ssub.s32 %s17, %s24
    %s59 = sor.u32 %s57, %s58
    %p60 = scmp.eq.s32.totalorder %s59, 0
    %s62 = sadd.s32 %s61, 1
    %s63 = scalar_select %p60, %s61, %s62
    %p66 = pneg %p60
    %p67 = scmp.eq.s32.totalorder %s9, 3
    %p68 = por %p66, %p67
    %p69 = scmp.ne.s32.totalorder %s61, %s64
    %p70 = scmp.eq.s32.totalorder %s9, 0
    %p71 = por %p69, %p70
    %p72 = scmp.ne.s32.totalorder %s61, %s64
    %p73 = scmp.eq.s32.totalorder %s14, 3
    %p74 = por %p72, %p73
    %p75 = scmp.ne.s32.totalorder %s64, %s65
    %p76 = scmp.eq.s32.totalorder %s14, 0
    %p77 = por %p75, %p76
    %p78 = scmp.ne.s32.totalorder %s64, %s65
    %p79 = scmp.eq.s32.totalorder %s15, 3
    %p80 = por %p78, %p79
    %p82 = scmp.ne.s32.totalorder %s65, %s81
    %p83 = scmp.eq.s32.totalorder %s15, 0
    %p84 = por %p82, %p83
    %s85 = ssub.s32 %s16, %s28
    %p86 = scmp.eq.s32.totalorder %s85, 0
    %s88 = sadd.s32 %s87, 1
    %s89 = scalar_select %p86, %s87, %s88
    %p92 = pneg %p86
    %p93 = scmp.eq.s32.totalorder %s9, 3
    %p94 = por %p92, %p93
    %p95 = scmp.ne.s32.totalorder %s87, %s90
    %p96 = scmp.eq.s32.totalorder %s9, 0
    %p97 = por %p95, %p96
    %p98 = scmp.ne.s32.totalorder %s87, %s90
    %p99 = scmp.eq.s32.totalorder %s14, 3
    %p100 = por %p98, %p99
    %p101 = scmp.ne.s32.totalorder %s90, %s91
    %p102 = scmp.eq.s32.totalorder %s14, 0
    %p103 = por %p101, %p102
    %p104 = scmp.ne.s32.totalorder %s90, %s91
    %p105 = scmp.eq.s32.totalorder %s15, 3
    %p106 = por %p104, %p105
    %p108 = scmp.ne.s32.totalorder %s91, %s107
    %p109 = scmp.eq.s32.totalorder %s15, 0
    %p110 = por %p108, %p109
    %s111 = ssub.s32 %s16, %s28
    %p112 = scmp.eq.s32.totalorder %s111, 0
    %s114 = sadd.s32 %s113, 1
    %s115 = scalar_select %p112, %s113, %s114
    %p118 = pneg %p112
    %p119 = scmp.eq.s32.totalorder %s9, 3
    %p120 = por %p118, %p119
    %p121 = scmp.ne.s32.totalorder %s113, %s116
    %p122 = scmp.eq.s32.totalorder %s9, 0
    %p123 = por %p121, %p122
    %p124 = scmp.ne.s32.totalorder %s113, %s116
    %p125 = scmp.eq.s32.totalorder %s14, 3
    %p126 = por %p124, %p125
    %p127 = scmp.ne.s32.totalorder %s116, %s117
    %p128 = scmp.eq.s32.totalorder %s14, 0
    %p129 = por %p127, %p128
    %p130 = scmp.ne.s32.totalorder %s116, %s117
    %p131 = scmp.eq.s32.totalorder %s15, 3
    %p132 = por %p130, %p131
    %p134 = scmp.ne.s32.totalorder %s117, %s133
    %p135 = scmp.eq.s32.totalorder %s15, 0
    %p136 = por %p134, %p135
    %p137 = scmp.le.s32.totalorder 1, %s9
    %p138 = scmp.lt.s32.totalorder %s9, 5
    %p139 = pnand %p137, %p138
    %p140 = pneg %p139
    // Predicated region
    $region9: #{tpu_custom_call.1} parent=5 // pred_check
      _
    $region10: #{tpu_custom_call.1} parent=5 // pred_check_branch
      %142 = sbr.rel (%p139) target = $region12
    $region11: #{tpu_custom_call.1} parent=5 // pred_region
      %s143 = ssub.s32 %s9, 1
    $region12: #{tpu_custom_call.1} parent=5 // pred_fallthru
      _
    %p144 = scmp.lt.s32.totalorder %s9, 4
    // Predicated region
    $region13: #{tpu_custom_call.1} parent=5 // pred_check
      %p145 = pneg %p144
    $region14: #{tpu_custom_call.1} parent=5 // pred_check_branch
      %147 = sbr.rel (%p145) target = $region16
    $region15: #{tpu_custom_call.1} parent=5 // pred_region
      // Predicated region
      $region17: #{tpu_custom_call.1} parent=15 // pred_check
        %p148 = pneg %p43
      $region18: #{tpu_custom_call.1} parent=15 // pred_check_branch
        %150 = sbr.rel (%p148) target = $region20
      $region19: #{tpu_custom_call.1} parent=15 // pred_region
        %s151 = smul.u32 32, %s17
        %p152 = scmp.lt.s32.totalorder %s16, 1
        %s153 = scalar_select %p152, %s16, 1
        %p154 = scmp.lt.s32.totalorder %s151, 63
        %s155 = scalar_select %p154, %s151, 63
        %s156 = smul.addr %s153, 64
        %s157 = sadd.s32 %s155, %s156
        %s158 = smul.addr %s157, 8
        %s159 = scalar_lea.vmem %s0, %s158
        %s160 = smul.u32 32, %s17
      $region20: #{tpu_custom_call.1} parent=15 // pred_fallthru
        _
      // Predicated region
      $region21: #{tpu_custom_call.1} parent=15 // pred_check
        %p161 = pneg %p71
      $region22: #{tpu_custom_call.1} parent=15 // pred_check_branch
        %163 = sbr.rel (%p161) target = $region24
      $region23: #{tpu_custom_call.1} parent=15 // pred_region
        %s164 = smul.u32 2, %s17
        %p165 = scmp.lt.s32.totalorder %s16, 1
        %s166 = scalar_select %p165, %s16, 1
        %p167 = scmp.lt.s32.totalorder %s164, 3
        %s168 = scalar_select %p167, %s164, 3
        %s169 = smul.addr %s166, 4
        %s170 = sadd.s32 %s168, %s169
        %s171 = smul.addr %s170, 4
        %s172 = scalar_lea.vmem %s1, %s171
        %s173 = smul.u32 2, %s17
      $region24: #{tpu_custom_call.1} parent=15 // pred_fallthru
        _
      // Predicated region
      $region25: #{tpu_custom_call.1} parent=15 // pred_check
        %p174 = pneg %p97
      $region26: #{tpu_custom_call.1} parent=15 // pred_check_branch
        %176 = sbr.rel (%p174) target = $region28
      $region27: #{tpu_custom_call.1} parent=15 // pred_region
        %p177 = scmp.lt.s32.totalorder %s16, 1
        %s178 = scalar_select %p177, %s16, 1
        %s179 = smul.addr %s178, 2
        %s180 = smul.addr %s179, 4
        %s181 = scalar_lea.vmem %s2, %s180
      $region28: #{tpu_custom_call.1} parent=15 // pred_fallthru
        _
    $region16: #{tpu_custom_call.1} parent=5 // pred_fallthru
      _
    %p182 = scmp.le.s32.totalorder 1, %s9
    %p183 = scmp.lt.s32.totalorder %s9, 5
    %p184 = pnand %p182, %p183
    %p185 = pneg %p184
    // Predicated region
    $region29: #{tpu_custom_call.1} parent=5 // pred_check
      _
    $region30: #{tpu_custom_call.1} parent=5 // pred_check_branch
      %187 = sbr.rel (%p184) target = $region32
    $region31: #{tpu_custom_call.1} parent=5 // pred_region
      %s188 = ssub.s32 %s9, 1
      %s189 = smul.u32 32, %s19
      %p190 = scmp.lt.s32.totalorder %s18, 1
      %s191 = scalar_select %p190, %s18, 1
      %p192 = scmp.lt.s32.totalorder %s189, 63
      %s193 = scalar_select %p192, %s189, 63
      %s194 = smul.addr %s191, 64
      %s195 = sadd.s32 %s193, %s194
      %s196 = smul.addr %s195, 8
      %s197 = scalar_lea.vmem %s0, %s196
      %p198 = pneg %p49
      %p199 = pneg %p46
      %s200 = smul.u32 2, %s19
      %p201 = scmp.lt.s32.totalorder %s18, 1
      %s202 = scalar_select %p201, %s18, 1
      %p203 = scmp.lt.s32.totalorder %s200, 3
      %s204 = scalar_select %p203, %s200, 3
      %s205 = smul.addr %s202, 4
      %s206 = sadd.s32 %s204, %s205
      %s207 = smul.addr %s206, 4
      %s208 = scalar_lea.vmem %s1, %s207
      %p209 = pneg %p77
      %p210 = pneg %p74
      %p211 = scmp.lt.s32.totalorder %s18, 1
      %s212 = scalar_select %p211, %s18, 1
      %s213 = smul.addr %s212, 2
      %s214 = smul.addr %s213, 4
      %s215 = scalar_lea.vmem %s2, %s214
      %p216 = pneg %p103
      %p217 = pneg %p100
      %p218 = pneg %p129
      %p219 = pneg %p126
      %p220 = scmp.lt.s32.totalorder %s18, 1
      %s221 = scalar_select %p220, %s18, 1
      %s222 = smul.addr %s221, 2
      %s223 = smul.addr %s222, 4
      %s224 = scalar_lea.vmem %s3, %s223
      %s225 = smul.u32 32, %s19
      %p226 = scmp.lt.s32.totalorder %s18, 1
      %s227 = scalar_select %p226, %s18, 1
      %p228 = scmp.lt.s32.totalorder %s225, 63
      %s229 = scalar_select %p228, %s225, 63
      %s230 = smul.addr %s227, 64
      %s231 = sadd.s32 %s229, %s230
      %s232 = smul.addr %s231, 8
      %s233 = scalar_lea.vmem %s0, %s232
      %s234 = smul.u32 32, %s19
      %s235 = smul.u32 2, %s19
      %p236 = scmp.lt.s32.totalorder %s18, 1
      %s237 = scalar_select %p236, %s18, 1
      %p238 = scmp.lt.s32.totalorder %s235, 3
      %s239 = scalar_select %p238, %s235, 3
      %s240 = smul.addr %s237, 4
      %s241 = sadd.s32 %s239, %s240
      %s242 = smul.addr %s241, 4
      %s243 = scalar_lea.vmem %s1, %s242
      %s244 = smul.u32 2, %s19
      %p245 = scmp.lt.s32.totalorder %s18, 1
      %s246 = scalar_select %p245, %s18, 1
      %s247 = smul.addr %s246, 2
      %s248 = smul.addr %s247, 4
      %s249 = scalar_lea.vmem %s2, %s248
      %p250 = scmp.lt.s32.totalorder %s18, 1
      %s251 = scalar_select %p250, %s18, 1
      %s252 = smul.addr %s251, 2
      %s253 = smul.addr %s252, 4
      %s254 = scalar_lea.vmem %s3, %s253
      %p255 = scmp.eq.s32.totalorder %s19, 0
      // Predicated region
      $region33: #{tpu_custom_call.1} parent=31 // pred_check
        %p256 = pneg %p255
      $region34: #{tpu_custom_call.1} parent=31 // pred_check_branch
        %258 = sbr.rel (%p256) target = $region36
      $region35: #{tpu_custom_call.1} parent=31 // pred_region
        %259 = vst [vmem:[#allocation2] sm:$0xff] 0.0
      $region36: #{tpu_custom_call.1} parent=31 // pred_fallthru
        _
      %v260 = vld [vmem:[%s233] sm:$0xff]
      %v261 = vld [vmem:[%s233 + $0x8] sm:$0xff]
      %v262 = vld [vmem:[%s233 + $0x10] sm:$0xff]
      %v263 = vld [vmem:[%s233 + $0x18] sm:$0xff]
      %v264 = vld [vmem:[%s233 + $0x20] sm:$0xff]
      %v265 = vld [vmem:[%s233 + $0x28] sm:$0xff]
      %v266 = vld [vmem:[%s233 + $0x30] sm:$0xff]
      %v267 = vld [vmem:[%s233 + $0x38] sm:$0xff]
      %v268 = vld [vmem:[%s233 + $0x40] sm:$0xff]
      %v269 = vld [vmem:[%s233 + $0x48] sm:$0xff]
      %v270 = vld [vmem:[%s233 + $0x50] sm:$0xff]
      %v271 = vld [vmem:[%s233 + $0x58] sm:$0xff]
      %v272 = vld [vmem:[%s233 + $0x60] sm:$0xff]
      %v273 = vld [vmem:[%s233 + $0x68] sm:$0xff]
      %v274 = vld [vmem:[%s233 + $0x70] sm:$0xff]
      %v275 = vld [vmem:[%s233 + $0x78] sm:$0xff]
      %v276 = vld [vmem:[%s233 + $0x80] sm:$0xff]
      %v277 = vld [vmem:[%s233 + $0x88] sm:$0xff]
      %v278 = vld [vmem:[%s233 + $0x90] sm:$0xff]
      %v279 = vld [vmem:[%s233 + $0x98] sm:$0xff]
      %v280 = vld [vmem:[%s233 + $0xa0] sm:$0xff]
      %v281 = vld [vmem:[%s233 + $0xa8] sm:$0xff]
      %v282 = vld [vmem:[%s233 + $0xb0] sm:$0xff]
      %v283 = vld [vmem:[%s233 + $0xb8] sm:$0xff]
      %v284 = vld [vmem:[%s233 + $0xc0] sm:$0xff]
      %v285 = vld [vmem:[%s233 + $0xc8] sm:$0xff]
      %v286 = vld [vmem:[%s233 + $0xd0] sm:$0xff]
      %v287 = vld [vmem:[%s233 + $0xd8] sm:$0xff]
      %v288 = vld [vmem:[%s233 + $0xe0] sm:$0xff]
      %v289 = vld [vmem:[%s233 + $0xe8] sm:$0xff]
      %v290 = vld [vmem:[%s233 + $0xf0] sm:$0xff]
      %v291 = vld [vmem:[%s233 + $0xf8] sm:$0xff]
      %v292 = vld [vmem:[%s243] sm:$0x77]
      %v293 = vld [vmem:[%s249] sm:$0x77]
      %v294 = vlaneseq
      %v295 = vshrl.u32 %v294, 7
      %v296 = vadd.s32 %v295, 8
      %v297 = vadd.s32 %v295, 16
      %v298 = vadd.s32 %v295, 24
      %v299 = vadd.s32 %v295, 32
      %v300 = vadd.s32 %v295, 40
      %v301 = vadd.s32 %v295, 48
      %v302 = vadd.s32 %v295, 56
      %v303 = vadd.s32 %v295, 64
      %v304 = vadd.s32 %v295, 72
      %v305 = vadd.s32 %v295, 80
      %v306 = vadd.s32 %v295, 88
      %v307 = vadd.s32 %v295, 96
      %v308 = vadd.s32 %v295, 104
      %v309 = vadd.s32 %v295, 112
      %v310 = vadd.s32 %v295, 120
      %v311 = vadd.s32 %v295, 128
      %v312 = vadd.s32 %v295, 136
      %v313 = vadd.s32 %v295, 144
      %v314 = vadd.s32 %v295, 152
      %v315 = vadd.s32 %v295, 160
      %v316 = vadd.s32 %v295, 168
      %v317 = vadd.s32 %v295, 176
      %v318 = vadd.s32 %v295, 184
      %v319 = vadd.s32 %v295, 192
      %v320 = vadd.s32 %v295, 200
      %v321 = vadd.s32 %v295, 208
      %v322 = vadd.s32 %v295, 216
      %v323 = vadd.s32 %v295, 224
      %v324 = vadd.s32 %v295, 232
      %v325 = vadd.s32 %v295, 240
      %v326 = vadd.s32 %v295, 248
      %v327 = vlaneseq
      %v328 = vand.u32 %v327, 127
      %v329 = vadd.s32 %v328, 128
      %v330 = vlaneseq
      %v331 = vshrl.u32 %v330, 7
      %v332 = vsub.s32 0, %v331
      %v333 = vrot.slane %v292, %v332
      %v334 = vlaneseq
      %v335 = vshrl.u32 %v334, 7
      %v336 = vsub.s32 4, %v335
      %v337 = vrot.slane %v292, %v336
      %v338 = vlaneseq
      %v339 = vshrl.u32 %v338, 7
      %v340 = vsub.s32 0, %v339
      %v341 = vrot.slane %v333, %v340
      %v342 = vlaneseq
      %v343 = vshrl.u32 %v342, 7
      %v344 = vsub.s32 0, %v343
      %v345 = vrot.slane %v337, %v344
      %vm346 = vcmp.eq.s32.totalorder %v295, %v341
      %vm347 = vcmp.eq.s32.totalorder %v295, %v345
      %vm348 = vcmp.eq.s32.totalorder %v296, %v341
      %vm349 = vcmp.eq.s32.totalorder %v296, %v345
      %vm350 = vcmp.eq.s32.totalorder %v297, %v341
      %vm351 = vcmp.eq.s32.totalorder %v297, %v345
      %vm352 = vcmp.eq.s32.totalorder %v298, %v341
      %vm353 = vcmp.eq.s32.totalorder %v298, %v345
      %vm354 = vcmp.eq.s32.totalorder %v299, %v341
      %vm355 = vcmp.eq.s32.totalorder %v299, %v345
      %vm356 = vcmp.eq.s32.totalorder %v300, %v341
      %vm357 = vcmp.eq.s32.totalorder %v300, %v345
      %vm358 = vcmp.eq.s32.totalorder %v301, %v341
      %vm359 = vcmp.eq.s32.totalorder %v301, %v345
      %vm360 = vcmp.eq.s32.totalorder %v302, %v341
      %vm361 = vcmp.eq.s32.totalorder %v302, %v345
      %vm362 = vcmp.eq.s32.totalorder %v303, %v341
      %vm363 = vcmp.eq.s32.totalorder %v303, %v345
      %vm364 = vcmp.eq.s32.totalorder %v304, %v341
      %vm365 = vcmp.eq.s32.totalorder %v304, %v345
      %vm366 = vcmp.eq.s32.totalorder %v305, %v341
      %vm367 = vcmp.eq.s32.totalorder %v305, %v345
      %vm368 = vcmp.eq.s32.totalorder %v306, %v341
      %vm369 = vcmp.eq.s32.totalorder %v306, %v345
      %vm370 = vcmp.eq.s32.totalorder %v307, %v341
      %vm371 = vcmp.eq.s32.totalorder %v307, %v345
      %vm372 = vcmp.eq.s32.totalorder %v308, %v341
      %vm373 = vcmp.eq.s32.totalorder %v308, %v345
      %vm374 = vcmp.eq.s32.totalorder %v309, %v341
      %vm375 = vcmp.eq.s32.totalorder %v309, %v345
      %vm376 = vcmp.eq.s32.totalorder %v310, %v341
      %vm377 = vcmp.eq.s32.totalorder %v310, %v345
      %vm378 = vcmp.eq.s32.totalorder %v311, %v341
      %vm379 = vcmp.eq.s32.totalorder %v311, %v345
      %vm380 = vcmp.eq.s32.totalorder %v312, %v341
      %vm381 = vcmp.eq.s32.totalorder %v312, %v345
      %vm382 = vcmp.eq.s32.totalorder %v313, %v341
      %vm383 = vcmp.eq.s32.totalorder %v313, %v345
      %vm384 = vcmp.eq.s32.totalorder %v314, %v341
      %vm385 = vcmp.eq.s32.totalorder %v314, %v345
      %vm386 = vcmp.eq.s32.totalorder %v315, %v341
      %vm387 = vcmp.eq.s32.totalorder %v315, %v345
      %vm388 = vcmp.eq.s32.totalorder %v316, %v341
      %vm389 = vcmp.eq.s32.totalorder %v316, %v345
      %vm390 = vcmp.eq.s32.totalorder %v317, %v341
      %vm391 = vcmp.eq.s32.totalorder %v317, %v345
      %vm392 = vcmp.eq.s32.totalorder %v318, %v341
      %vm393 = vcmp.eq.s32.totalorder %v318, %v345
      %vm394 = vcmp.eq.s32.totalorder %v319, %v341
      %vm395 = vcmp.eq.s32.totalorder %v319, %v345
      %vm396 = vcmp.eq.s32.totalorder %v320, %v341
      %vm397 = vcmp.eq.s32.totalorder %v320, %v345
      %vm398 = vcmp.eq.s32.totalorder %v321, %v341
      %vm399 = vcmp.eq.s32.totalorder %v321, %v345
      %vm400 = vcmp.eq.s32.totalorder %v322, %v341
      %vm401 = vcmp.eq.s32.totalorder %v322, %v345
      %vm402 = vcmp.eq.s32.totalorder %v323, %v341
      %vm403 = vcmp.eq.s32.totalorder %v323, %v345
      %vm404 = vcmp.eq.s32.totalorder %v324, %v341
      %vm405 = vcmp.eq.s32.totalorder %v324, %v345
      %vm406 = vcmp.eq.s32.totalorder %v325, %v341
      %vm407 = vcmp.eq.s32.totalorder %v325, %v345
      %vm408 = vcmp.eq.s32.totalorder %v326, %v341
      %vm409 = vcmp.eq.s32.totalorder %v326, %v345
      %v410 = vsel %vm346, 1, 0
      %v411 = vsel %vm347, 1, 0
      %v412 = vsel %vm348, 1, 0
      %v413 = vsel %vm349, 1, 0
      %v414 = vsel %vm350, 1, 0
      %v415 = vsel %vm351, 1, 0
      %v416 = vsel %vm352, 1, 0
      %v417 = vsel %vm353, 1, 0
      %v418 = vsel %vm354, 1, 0
      %v419 = vsel %vm355, 1, 0
      %v420 = vsel %vm356, 1, 0
      %v421 = vsel %vm357, 1, 0
      %v422 = vsel %vm358, 1, 0
      %v423 = vsel %vm359, 1, 0
      %v424 = vsel %vm360, 1, 0
      %v425 = vsel %vm361, 1, 0
      %v426 = vsel %vm362, 1, 0
      %v427 = vsel %vm363, 1, 0
      %v428 = vsel %vm364, 1, 0
      %v429 = vsel %vm365, 1, 0
      %v430 = vsel %vm366, 1, 0
      %v431 = vsel %vm367, 1, 0
      %v432 = vsel %vm368, 1, 0
      %v433 = vsel %vm369, 1, 0
      %v434 = vsel %vm370, 1, 0
      %v435 = vsel %vm371, 1, 0
      %v436 = vsel %vm372, 1, 0
      %v437 = vsel %vm373, 1, 0
      %v438 = vsel %vm374, 1, 0
      %v439 = vsel %vm375, 1, 0
      %v440 = vsel %vm376, 1, 0
      %v441 = vsel %vm377, 1, 0
      %v442 = vsel %vm378, 1, 0
      %v443 = vsel %vm379, 1, 0
      %v444 = vsel %vm380, 1, 0
      %v445 = vsel %vm381, 1, 0
      %v446 = vsel %vm382, 1, 0
      %v447 = vsel %vm383, 1, 0
      %v448 = vsel %vm384, 1, 0
      %v449 = vsel %vm385, 1, 0
      %v450 = vsel %vm386, 1, 0
      %v451 = vsel %vm387, 1, 0
      %v452 = vsel %vm388, 1, 0
      %v453 = vsel %vm389, 1, 0
      %v454 = vsel %vm390, 1, 0
      %v455 = vsel %vm391, 1, 0
      %v456 = vsel %vm392, 1, 0
      %v457 = vsel %vm393, 1, 0
      %v458 = vsel %vm394, 1, 0
      %v459 = vsel %vm395, 1, 0
      %v460 = vsel %vm396, 1, 0
      %v461 = vsel %vm397, 1, 0
      %v462 = vsel %vm398, 1, 0
      %v463 = vsel %vm399, 1, 0
      %v464 = vsel %vm400, 1, 0
      %v465 = vsel %vm401, 1, 0
      %v466 = vsel %vm402, 1, 0
      %v467 = vsel %vm403, 1, 0
      %v468 = vsel %vm404, 1, 0
      %v469 = vsel %vm405, 1, 0
      %v470 = vsel %vm406, 1, 0
      %v471 = vsel %vm407, 1, 0
      %v472 = vsel %vm408, 1, 0
      %v473 = vsel %vm409, 1, 0
      %v474 = vcvt.s32.f32 %v410
      %v475 = vcvt.s32.f32 %v411
      %v476 = vcvt.s32.f32 %v412
      %v477 = vcvt.s32.f32 %v413
      %v478 = vcvt.s32.f32 %v414
      %v479 = vcvt.s32.f32 %v415
      %v480 = vcvt.s32.f32 %v416
      %v481 = vcvt.s32.f32 %v417
      %v482 = vcvt.s32.f32 %v418
      %v483 = vcvt.s32.f32 %v419
      %v484 = vcvt.s32.f32 %v420
      %v485 = vcvt.s32.f32 %v421
      %v486 = vcvt.s32.f32 %v422
      %v487 = vcvt.s32.f32 %v423
      %v488 = vcvt.s32.f32 %v424
      %v489 = vcvt.s32.f32 %v425
      %v490 = vcvt.s32.f32 %v426
      %v491 = vcvt.s32.f32 %v427
      %v492 = vcvt.s32.f32 %v428
      %v493 = vcvt.s32.f32 %v429
      %v494 = vcvt.s32.f32 %v430
      %v495 = vcvt.s32.f32 %v431
      %v496 = vcvt.s32.f32 %v432
      %v497 = vcvt.s32.f32 %v433
      %v498 = vcvt.s32.f32 %v434
      %v499 = vcvt.s32.f32 %v435
      %v500 = vcvt.s32.f32 %v436
      %v501 = vcvt.s32.f32 %v437
      %v502 = vcvt.s32.f32 %v438
      %v503 = vcvt.s32.f32 %v439
      %v504 = vcvt.s32.f32 %v440
      %v505 = vcvt.s32.f32 %v441
      %v506 = vcvt.s32.f32 %v442
      %v507 = vcvt.s32.f32 %v443
      %v508 = vcvt.s32.f32 %v444
      %v509 = vcvt.s32.f32 %v445
      %v510 = vcvt.s32.f32 %v446
      %v511 = vcvt.s32.f32 %v447
      %v512 = vcvt.s32.f32 %v448
      %v513 = vcvt.s32.f32 %v449
      %v514 = vcvt.s32.f32 %v450
      %v515 = vcvt.s32.f32 %v451
      %v516 = vcvt.s32.f32 %v452
      %v517 = vcvt.s32.f32 %v453
      %v518 = vcvt.s32.f32 %v454
      %v519 = vcvt.s32.f32 %v455
      %v520 = vcvt.s32.f32 %v456
      %v521 = vcvt.s32.f32 %v457
      %v522 = vcvt.s32.f32 %v458
      %v523 = vcvt.s32.f32 %v459
      %v524 = vcvt.s32.f32 %v460
      %v525 = vcvt.s32.f32 %v461
      %v526 = vcvt.s32.f32 %v462
      %v527 = vcvt.s32.f32 %v463
      %v528 = vcvt.s32.f32 %v464
      %v529 = vcvt.s32.f32 %v465
      %v530 = vcvt.s32.f32 %v466
      %v531 = vcvt.s32.f32 %v467
      %v532 = vcvt.s32.f32 %v468
      %v533 = vcvt.s32.f32 %v469
      %v534 = vcvt.s32.f32 %v470
      %v535 = vcvt.s32.f32 %v471
      %v536 = vcvt.s32.f32 %v472
      %v537 = vcvt.s32.f32 %v473
      %v538 = vlaneseq
      %v539 = vshrl.u32 %v538, 7
      %v540 = vsub.s32 1, %v539
      %v541 = vrot.slane %v292, %v540
      %v542 = vlaneseq
      %v543 = vshrl.u32 %v542, 7
      %v544 = vsub.s32 5, %v543
      %v545 = vrot.slane %v292, %v544
      %v546 = vlaneseq
      %v547 = vshrl.u32 %v546, 7
      %v548 = vsub.s32 1, %v547
      %v549 = vrot.slane %v541, %v548
      %v550 = vlaneseq
      %v551 = vshrl.u32 %v550, 7
      %v552 = vsub.s32 1, %v551
      %v553 = vrot.slane %v545, %v552
      %vm554 = vcmp.eq.s32.totalorder %v295, %v549
      %vm555 = vcmp.eq.s32.totalorder %v295, %v553
      %vm556 = vcmp.eq.s32.totalorder %v296, %v549
      %vm557 = vcmp.eq.s32.totalorder %v296, %v553
      %vm558 = vcmp.eq.s32.totalorder %v297, %v549
      %vm559 = vcmp.eq.s32.totalorder %v297, %v553
      %vm560 = vcmp.eq.s32.totalorder %v298, %v549
      %vm561 = vcmp.eq.s32.totalorder %v298, %v553
      %vm562 = vcmp.eq.s32.totalorder %v299, %v549
      %vm563 = vcmp.eq.s32.totalorder %v299, %v553
      %vm564 = vcmp.eq.s32.totalorder %v300, %v549
      %vm565 = vcmp.eq.s32.totalorder %v300, %v553
      %vm566 = vcmp.eq.s32.totalorder %v301, %v549
      %vm567 = vcmp.eq.s32.totalorder %v301, %v553
      %vm568 = vcmp.eq.s32.totalorder %v302, %v549
      %vm569 = vcmp.eq.s32.totalorder %v302, %v553
      %vm570 = vcmp.eq.s32.totalorder %v303, %v549
      %vm571 = vcmp.eq.s32.totalorder %v303, %v553
      %vm572 = vcmp.eq.s32.totalorder %v304, %v549
      %vm573 = vcmp.eq.s32.totalorder %v304, %v553
      %vm574 = vcmp.eq.s32.totalorder %v305, %v549
      %vm575 = vcmp.eq.s32.totalorder %v305, %v553
      %vm576 = vcmp.eq.s32.totalorder %v306, %v549
      %vm577 = vcmp.eq.s32.totalorder %v306, %v553
      %vm578 = vcmp.eq.s32.totalorder %v307, %v549
      %vm579 = vcmp.eq.s32.totalorder %v307, %v553
      %vm580 = vcmp.eq.s32.totalorder %v308, %v549
      %vm581 = vcmp.eq.s32.totalorder %v308, %v553
      %vm582 = vcmp.eq.s32.totalorder %v309, %v549
      %vm583 = vcmp.eq.s32.totalorder %v309, %v553
      %vm584 = vcmp.eq.s32.totalorder %v310, %v549
      %vm585 = vcmp.eq.s32.totalorder %v310, %v553
      %vm586 = vcmp.eq.s32.totalorder %v311, %v549
      %vm587 = vcmp.eq.s32.totalorder %v311, %v553
      %vm588 = vcmp.eq.s32.totalorder %v312, %v549
      %vm589 = vcmp.eq.s32.totalorder %v312, %v553
      %vm590 = vcmp.eq.s32.totalorder %v313, %v549
      %vm591 = vcmp.eq.s32.totalorder %v313, %v553
      %vm592 = vcmp.eq.s32.totalorder %v314, %v549
      %vm593 = vcmp.eq.s32.totalorder %v314, %v553
      %vm594 = vcmp.eq.s32.totalorder %v315, %v549
      %vm595 = vcmp.eq.s32.totalorder %v315, %v553
      %vm596 = vcmp.eq.s32.totalorder %v316, %v549
      %vm597 = vcmp.eq.s32.totalorder %v316, %v553
      %vm598 = vcmp.eq.s32.totalorder %v317, %v549
      %vm599 = vcmp.eq.s32.totalorder %v317, %v553
      %vm600 = vcmp.eq.s32.totalorder %v318, %v549
      %vm601 = vcmp.eq.s32.totalorder %v318, %v553
      %vm602 = vcmp.eq.s32.totalorder %v319, %v549
      %vm603 = vcmp.eq.s32.totalorder %v319, %v553
      %vm604 = vcmp.eq.s32.totalorder %v320, %v549
      %vm605 = vcmp.eq.s32.totalorder %v320, %v553
      %vm606 = vcmp.eq.s32.totalorder %v321, %v549
      %vm607 = vcmp.eq.s32.totalorder %v321, %v553
      %vm608 = vcmp.eq.s32.totalorder %v322, %v549
      %vm609 = vcmp.eq.s32.totalorder %v322, %v553
      %vm610 = vcmp.eq.s32.totalorder %v323, %v549
      %vm611 = vcmp.eq.s32.totalorder %v323, %v553
      %vm612 = vcmp.eq.s32.totalorder %v324, %v549
      %vm613 = vcmp.eq.s32.totalorder %v324, %v553
      %vm614 = vcmp.eq.s32.totalorder %v325, %v549
      %vm615 = vcmp.eq.s32.totalorder %v325, %v553
      %vm616 = vcmp.eq.s32.totalorder %v326, %v549
      %vm617 = vcmp.eq.s32.totalorder %v326, %v553
      %v618 = vsel %vm554, 1, 0
      %v619 = vsel %vm555, 1, 0
      %v620 = vsel %vm556, 1, 0
      %v621 = vsel %vm557, 1, 0
      %v622 = vsel %vm558, 1, 0
      %v623 = vsel %vm559, 1, 0
      %v624 = vsel %vm560, 1, 0
      %v625 = vsel %vm561, 1, 0
      %v626 = vsel %vm562, 1, 0
      %v627 = vsel %vm563, 1, 0
      %v628 = vsel %vm564, 1, 0
      %v629 = vsel %vm565, 1, 0
      %v630 = vsel %vm566, 1, 0
      %v631 = vsel %vm567, 1, 0
      %v632 = vsel %vm568, 1, 0
      %v633 = vsel %vm569, 1, 0
      %v634 = vsel %vm570, 1, 0
      %v635 = vsel %vm571, 1, 0
      %v636 = vsel %vm572, 1, 0
      %v637 = vsel %vm573, 1, 0
      %v638 = vsel %vm574, 1, 0
      %v639 = vsel %vm575, 1, 0
      %v640 = vsel %vm576, 1, 0
      %v641 = vsel %vm577, 1, 0
      %v642 = vsel %vm578, 1, 0
      %v643 = vsel %vm579, 1, 0
      %v644 = vsel %vm580, 1, 0
      %v645 = vsel %vm581, 1, 0
      %v646 = vsel %vm582, 1, 0
      %v647 = vsel %vm583, 1, 0
      %v648 = vsel %vm584, 1, 0
      %v649 = vsel %vm585, 1, 0
      %v650 = vsel %vm586, 1, 0
      %v651 = vsel %vm587, 1, 0
      %v652 = vsel %vm588, 1, 0
      %v653 = vsel %vm589, 1, 0
      %v654 = vsel %vm590, 1, 0
      %v655 = vsel %vm591, 1, 0
      %v656 = vsel %vm592, 1, 0
      %v657 = vsel %vm593, 1, 0
      %v658 = vsel %vm594, 1, 0
      %v659 = vsel %vm595, 1, 0
      %v660 = vsel %vm596, 1, 0
      %v661 = vsel %vm597, 1, 0
      %v662 = vsel %vm598, 1, 0
      %v663 = vsel %vm599, 1, 0
      %v664 = vsel %vm600, 1, 0
      %v665 = vsel %vm601, 1, 0
      %v666 = vsel %vm602, 1, 0
      %v667 = vsel %vm603, 1, 0
      %v668 = vsel %vm604, 1, 0
      %v669 = vsel %vm605, 1, 0
      %v670 = vsel %vm606, 1, 0
      %v671 = vsel %vm607, 1, 0
      %v672 = vsel %vm608, 1, 0
      %v673 = vsel %vm609, 1, 0
      %v674 = vsel %vm610, 1, 0
      %v675 = vsel %vm611, 1, 0
      %v676 = vsel %vm612, 1, 0
      %v677 = vsel %vm613, 1, 0
      %v678 = vsel %vm614, 1, 0
      %v679 = vsel %vm615, 1, 0
      %v680 = vsel %vm616, 1, 0
      %v681 = vsel %vm617, 1, 0
      %v682 = vcvt.s32.f32 %v618
      %v683 = vcvt.s32.f32 %v619
      %v684 = vcvt.s32.f32 %v620
      %v685 = vcvt.s32.f32 %v621
      %v686 = vcvt.s32.f32 %v622
      %v687 = vcvt.s32.f32 %v623
      %v688 = vcvt.s32.f32 %v624
      %v689 = vcvt.s32.f32 %v625
      %v690 = vcvt.s32.f32 %v626
      %v691 = vcvt.s32.f32 %v627
      %v692 = vcvt.s32.f32 %v628
      %v693 = vcvt.s32.f32 %v629
      %v694 = vcvt.s32.f32 %v630
      %v695 = vcvt.s32.f32 %v631
      %v696 = vcvt.s32.f32 %v632
      %v697 = vcvt.s32.f32 %v633
      %v698 = vcvt.s32.f32 %v634
      %v699 = vcvt.s32.f32 %v635
      %v700 = vcvt.s32.f32 %v636
      %v701 = vcvt.s32.f32 %v637
      %v702 = vcvt.s32.f32 %v638
      %v703 = vcvt.s32.f32 %v639
      %v704 = vcvt.s32.f32 %v640
      %v705 = vcvt.s32.f32 %v641
      %v706 = vcvt.s32.f32 %v642
      %v707 = vcvt.s32.f32 %v643
      %v708 = vcvt.s32.f32 %v644
      %v709 = vcvt.s32.f32 %v645
      %v710 = vcvt.s32.f32 %v646
      %v711 = vcvt.s32.f32 %v647
      %v712 = vcvt.s32.f32 %v648
      %v713 = vcvt.s32.f32 %v649
      %v714 = vcvt.s32.f32 %v650
      %v715 = vcvt.s32.f32 %v651
      %v716 = vcvt.s32.f32 %v652
      %v717 = vcvt.s32.f32 %v653
      %v718 = vcvt.s32.f32 %v654
      %v719 = vcvt.s32.f32 %v655
      %v720 = vcvt.s32.f32 %v656
      %v721 = vcvt.s32.f32 %v657
      %v722 = vcvt.s32.f32 %v658
      %v723 = vcvt.s32.f32 %v659
      %v724 = vcvt.s32.f32 %v660
      %v725 = vcvt.s32.f32 %v661
      %v726 = vcvt.s32.f32 %v662
      %v727 = vcvt.s32.f32 %v663
      %v728 = vcvt.s32.f32 %v664
      %v729 = vcvt.s32.f32 %v665
      %v730 = vcvt.s32.f32 %v666
      %v731 = vcvt.s32.f32 %v667
      %v732 = vcvt.s32.f32 %v668
      %v733 = vcvt.s32.f32 %v669
      %v734 = vcvt.s32.f32 %v670
      %v735 = vcvt.s32.f32 %v671
      %v736 = vcvt.s32.f32 %v672
      %v737 = vcvt.s32.f32 %v673
      %v738 = vcvt.s32.f32 %v674
      %v739 = vcvt.s32.f32 %v675
      %v740 = vcvt.s32.f32 %v676
      %v741 = vcvt.s32.f32 %v677
      %v742 = vcvt.s32.f32 %v678
      %v743 = vcvt.s32.f32 %v679
      %v744 = vcvt.s32.f32 %v680
      %v745 = vcvt.s32.f32 %v681
      %v746 = vlaneseq
      %v747 = vshrl.u32 %v746, 7
      %v748 = vsub.s32 2, %v747
      %v749 = vrot.slane %v292, %v748
      %v750 = vlaneseq
      %v751 = vshrl.u32 %v750, 7
      %v752 = vsub.s32 6, %v751
      %v753 = vrot.slane %v292, %v752
      %v754 = vlaneseq
      %v755 = vshrl.u32 %v754, 7
      %v756 = vsub.s32 2, %v755
      %v757 = vrot.slane %v749, %v756
      %v758 = vlaneseq
      %v759 = vshrl.u32 %v758, 7
      %v760 = vsub.s32 2, %v759
      %v761 = vrot.slane %v753, %v760
      %vm762 = vcmp.eq.s32.totalorder %v295, %v757
      %vm763 = vcmp.eq.s32.totalorder %v295, %v761
      %vm764 = vcmp.eq.s32.totalorder %v296, %v757
      %vm765 = vcmp.eq.s32.totalorder %v296, %v761
      %vm766 = vcmp.eq.s32.totalorder %v297, %v757
      %vm767 = vcmp.eq.s32.totalorder %v297, %v761
      %vm768 = vcmp.eq.s32.totalorder %v298, %v757
      %vm769 = vcmp.eq.s32.totalorder %v298, %v761
      %vm770 = vcmp.eq.s32.totalorder %v299, %v757
      %vm771 = vcmp.eq.s32.totalorder %v299, %v761
      %vm772 = vcmp.eq.s32.totalorder %v300, %v757
      %vm773 = vcmp.eq.s32.totalorder %v300, %v761
      %vm774 = vcmp.eq.s32.totalorder %v301, %v757
      %vm775 = vcmp.eq.s32.totalorder %v301, %v761
      %vm776 = vcmp.eq.s32.totalorder %v302, %v757
      %vm777 = vcmp.eq.s32.totalorder %v302, %v761
      %vm778 = vcmp.eq.s32.totalorder %v303, %v757
      %vm779 = vcmp.eq.s32.totalorder %v303, %v761
      %vm780 = vcmp.eq.s32.totalorder %v304, %v757
      %vm781 = vcmp.eq.s32.totalorder %v304, %v761
      %vm782 = vcmp.eq.s32.totalorder %v305, %v757
      %vm783 = vcmp.eq.s32.totalorder %v305, %v761
      %vm784 = vcmp.eq.s32.totalorder %v306, %v757
      %vm785 = vcmp.eq.s32.totalorder %v306, %v761
      %vm786 = vcmp.eq.s32.totalorder %v307, %v757
      %vm787 = vcmp.eq.s32.totalorder %v307, %v761
      %vm788 = vcmp.eq.s32.totalorder %v308, %v757
      %vm789 = vcmp.eq.s32.totalorder %v308, %v761
      %vm790 = vcmp.eq.s32.totalorder %v309, %v757
      %vm791 = vcmp.eq.s32.totalorder %v309, %v761
      %vm792 = vcmp.eq.s32.totalorder %v310, %v757
      %vm793 = vcmp.eq.s32.totalorder %v310, %v761
      %vm794 = vcmp.eq.s32.totalorder %v311, %v757
      %vm795 = vcmp.eq.s32.totalorder %v311, %v761
      %vm796 = vcmp.eq.s32.totalorder %v312, %v757
      %vm797 = vcmp.eq.s32.totalorder %v312, %v761
      %vm798 = vcmp.eq.s32.totalorder %v313, %v757
      %vm799 = vcmp.eq.s32.totalorder %v313, %v761
      %vm800 = vcmp.eq.s32.totalorder %v314, %v757
      %vm801 = vcmp.eq.s32.totalorder %v314, %v761
      %vm802 = vcmp.eq.s32.totalorder %v315, %v757
      %vm803 = vcmp.eq.s32.totalorder %v315, %v761
      %vm804 = vcmp.eq.s32.totalorder %v316, %v757
      %vm805 = vcmp.eq.s32.totalorder %v316, %v761
      %vm806 = vcmp.eq.s32.totalorder %v317, %v757
      %vm807 = vcmp.eq.s32.totalorder %v317, %v761
      %vm808 = vcmp.eq.s32.totalorder %v318, %v757
      %vm809 = vcmp.eq.s32.totalorder %v318, %v761
      %vm810 = vcmp.eq.s32.totalorder %v319, %v757
      %vm811 = vcmp.eq.s32.totalorder %v319, %v761
      %vm812 = vcmp.eq.s32.totalorder %v320, %v757
      %vm813 = vcmp.eq.s32.totalorder %v320, %v761
      %vm814 = vcmp.eq.s32.totalorder %v321, %v757
      %vm815 = vcmp.eq.s32.totalorder %v321, %v761
      %vm816 = vcmp.eq.s32.totalorder %v322, %v757
      %vm817 = vcmp.eq.s32.totalorder %v322, %v761
      %vm818 = vcmp.eq.s32.totalorder %v323, %v757
      %vm819 = vcmp.eq.s32.totalorder %v323, %v761
      %vm820 = vcmp.eq.s32.totalorder %v324, %v757
      %vm821 = vcmp.eq.s32.totalorder %v324, %v761
      %vm822 = vcmp.eq.s32.totalorder %v325, %v757
      %vm823 = vcmp.eq.s32.totalorder %v325, %v761
      %vm824 = vcmp.eq.s32.totalorder %v326, %v757
      %vm825 = vcmp.eq.s32.totalorder %v326, %v761
      %v826 = vsel %vm762, 1, 0
      %v827 = vsel %vm763, 1, 0
      %v828 = vsel %vm764, 1, 0
      %v829 = vsel %vm765, 1, 0
      %v830 = vsel %vm766, 1, 0
      %v831 = vsel %vm767, 1, 0
      %v832 = vsel %vm768, 1, 0
      %v833 = vsel %vm769, 1, 0
      %v834 = vsel %vm770, 1, 0
      %v835 = vsel %vm771, 1, 0
      %v836 = vsel %vm772, 1, 0
      %v837 = vsel %vm773, 1, 0
      %v838 = vsel %vm774, 1, 0
      %v839 = vsel %vm775, 1, 0
      %v840 = vsel %vm776, 1, 0
      %v841 = vsel %vm777, 1, 0
      %v842 = vsel %vm778, 1, 0
      %v843 = vsel %vm779, 1, 0
      %v844 = vsel %vm780, 1, 0
      %v845 = vsel %vm781, 1, 0
      %v846 = vsel %vm782, 1, 0
      %v847 = vsel %vm783, 1, 0
      %v848 = vsel %vm784, 1, 0
      %v849 = vsel %vm785, 1, 0
      %v850 = vsel %vm786, 1, 0
      %v851 = vsel %vm787, 1, 0
      %v852 = vsel %vm788, 1, 0
      %v853 = vsel %vm789, 1, 0
      %v854 = vsel %vm790, 1, 0
      %v855 = vsel %vm791, 1, 0
      %v856 = vsel %vm792, 1, 0
      %v857 = vsel %vm793, 1, 0
      %v858 = vsel %vm794, 1, 0
      %v859 = vsel %vm795, 1, 0
      %v860 = vsel %vm796, 1, 0
      %v861 = vsel %vm797, 1, 0
      %v862 = vsel %vm798, 1, 0
      %v863 = vsel %vm799, 1, 0
      %v864 = vsel %vm800, 1, 0
      %v865 = vsel %vm801, 1, 0
      %v866 = vsel %vm802, 1, 0
      %v867 = vsel %vm803, 1, 0
      %v868 = vsel %vm804, 1, 0
      %v869 = vsel %vm805, 1, 0
      %v870 = vsel %vm806, 1, 0
      %v871 = vsel %vm807, 1, 0
      %v872 = vsel %vm808, 1, 0
      %v873 = vsel %vm809, 1, 0
      %v874 = vsel %vm810, 1, 0
      %v875 = vsel %vm811, 1, 0
      %v876 = vsel %vm812, 1, 0
      %v877 = vsel %vm813, 1, 0
      %v878 = vsel %vm814, 1, 0
      %v879 = vsel %vm815, 1, 0
      %v880 = vsel %vm816, 1, 0
      %v881 = vsel %vm817, 1, 0
      %v882 = vsel %vm818, 1, 0
      %v883 = vsel %vm819, 1, 0
      %v884 = vsel %vm820, 1, 0
      %v885 = vsel %vm821, 1, 0
      %v886 = vsel %vm822, 1, 0
      %v887 = vsel %vm823, 1, 0
      %v888 = vsel %vm824, 1, 0
      %v889 = vsel %vm825, 1, 0
      %v890 = vcvt.s32.f32 %v826
      %v891 = vcvt.s32.f32 %v827
      %v892 = vcvt.s32.f32 %v828
      %v893 = vcvt.s32.f32 %v829
      %v894 = vcvt.s32.f32 %v830
      %v895 = vcvt.s32.f32 %v831
      %v896 = vcvt.s32.f32 %v832
      %v897 = vcvt.s32.f32 %v833
      %v898 = vcvt.s32.f32 %v834
      %v899 = vcvt.s32.f32 %v835
      %v900 = vcvt.s32.f32 %v836
      %v901 = vcvt.s32.f32 %v837
      %v902 = vcvt.s32.f32 %v838
      %v903 = vcvt.s32.f32 %v839
      %v904 = vcvt.s32.f32 %v840
      %v905 = vcvt.s32.f32 %v841
      %v906 = vcvt.s32.f32 %v842
      %v907 = vcvt.s32.f32 %v843
      %v908 = vcvt.s32.f32 %v844
      %v909 = vcvt.s32.f32 %v845
      %v910 = vcvt.s32.f32 %v846
      %v911 = vcvt.s32.f32 %v847
      %v912 = vcvt.s32.f32 %v848
      %v913 = vcvt.s32.f32 %v849
      %v914 = vcvt.s32.f32 %v850
      %v915 = vcvt.s32.f32 %v851
      %v916 = vcvt.s32.f32 %v852
      %v917 = vcvt.s32.f32 %v853
      %v918 = vcvt.s32.f32 %v854
      %v919 = vcvt.s32.f32 %v855
      %v920 = vcvt.s32.f32 %v856
      %v921 = vcvt.s32.f32 %v857
      %v922 = vcvt.s32.f32 %v858
      %v923 = vcvt.s32.f32 %v859
      %v924 = vcvt.s32.f32 %v860
      %v925 = vcvt.s32.f32 %v861
      %v926 = vcvt.s32.f32 %v862
      %v927 = vcvt.s32.f32 %v863
      %v928 = vcvt.s32.f32 %v864
      %v929 = vcvt.s32.f32 %v865
      %v930 = vcvt.s32.f32 %v866
      %v931 = vcvt.s32.f32 %v867
      %v932 = vcvt.s32.f32 %v868
      %v933 = vcvt.s32.f32 %v869
      %v934 = vcvt.s32.f32 %v870
      %v935 = vcvt.s32.f32 %v871
      %v936 = vcvt.s32.f32 %v872
      %v937 = vcvt.s32.f32 %v873
      %v938 = vcvt.s32.f32 %v874
      %v939 = vcvt.s32.f32 %v875
      %v940 = vcvt.s32.f32 %v876
      %v941 = vcvt.s32.f32 %v877
      %v942 = vcvt.s32.f32 %v878
      %v943 = vcvt.s32.f32 %v879
      %v944 = vcvt.s32.f32 %v880
      %v945 = vcvt.s32.f32 %v881
      %v946 = vcvt.s32.f32 %v882
      %v947 = vcvt.s32.f32 %v883
      %v948 = vcvt.s32.f32 %v884
      %v949 = vcvt.s32.f32 %v885
      %v950 = vcvt.s32.f32 %v886
      %v951 = vcvt.s32.f32 %v887
      %v952 = vcvt.s32.f32 %v888
      %v953 = vcvt.s32.f32 %v889
      %954 = vset.pattern.permute.xlu0 0
      %955 = vperm.xlu0 %954, %v260
      %v956 = vpop.permute.xlu0 %955
      %957 = vset.pattern.permute.xlu0 0
      %958 = vperm.xlu0 %957, %v261
      %v959 = vpop.permute.xlu0 %958
      %960 = vset.pattern.permute.xlu0 0
      %961 = vperm.xlu0 %960, %v262
      %v962 = vpop.permute.xlu0 %961
      %963 = vset.pattern.permute.xlu0 0
      %964 = vperm.xlu0 %963, %v263
      %v965 = vpop.permute.xlu0 %964
      %966 = vset.pattern.permute.xlu0 0
      %967 = vperm.xlu0 %966, %v264
      %v968 = vpop.permute.xlu0 %967
      %969 = vset.pattern.permute.xlu0 0
      %970 = vperm.xlu0 %969, %v265
      %v971 = vpop.permute.xlu0 %970
      %972 = vset.pattern.permute.xlu0 0
      %973 = vperm.xlu0 %972, %v266
      %v974 = vpop.permute.xlu0 %973
      %975 = vset.pattern.permute.xlu0 0
      %976 = vperm.xlu0 %975, %v267
      %v977 = vpop.permute.xlu0 %976
      %978 = vset.pattern.permute.xlu0 0
      %979 = vperm.xlu0 %978, %v268
      %v980 = vpop.permute.xlu0 %979
      %981 = vset.pattern.permute.xlu0 0
      %982 = vperm.xlu0 %981, %v269
      %v983 = vpop.permute.xlu0 %982
      %984 = vset.pattern.permute.xlu0 0
      %985 = vperm.xlu0 %984, %v270
      %v986 = vpop.permute.xlu0 %985
      %987 = vset.pattern.permute.xlu0 0
      %988 = vperm.xlu0 %987, %v271
      %v989 = vpop.permute.xlu0 %988
      %990 = vset.pattern.permute.xlu0 0
      %991 = vperm.xlu0 %990, %v272
      %v992 = vpop.permute.xlu0 %991
      %993 = vset.pattern.permute.xlu0 0
      %994 = vperm.xlu0 %993, %v273
      %v995 = vpop.permute.xlu0 %994
      %996 = vset.pattern.permute.xlu0 0
      %997 = vperm.xlu0 %996, %v274
      %v998 = vpop.permute.xlu0 %997
      %999 = vset.pattern.permute.xlu0 0
      %1000 = vperm.xlu0 %999, %v275
      %v1001 = vpop.permute.xlu0 %1000
      %1002 = vset.pattern.permute.xlu0 0
      %1003 = vperm.xlu0 %1002, %v276
      %v1004 = vpop.permute.xlu0 %1003
      %1005 = vset.pattern.permute.xlu0 0
      %1006 = vperm.xlu0 %1005, %v277
      %v1007 = vpop.permute.xlu0 %1006
      %1008 = vset.pattern.permute.xlu0 0
      %1009 = vperm.xlu0 %1008, %v278
      %v1010 = vpop.permute.xlu0 %1009
      %1011 = vset.pattern.permute.xlu0 0
      %1012 = vperm.xlu0 %1011, %v279
      %v1013 = vpop.permute.xlu0 %1012
      %1014 = vset.pattern.permute.xlu0 0
      %1015 = vperm.xlu0 %1014, %v280
      %v1016 = vpop.permute.xlu0 %1015
      %1017 = vset.pattern.permute.xlu0 0
      %1018 = vperm.xlu0 %1017, %v281
      %v1019 = vpop.permute.xlu0 %1018
      %1020 = vset.pattern.permute.xlu0 0
      %1021 = vperm.xlu0 %1020, %v282
      %v1022 = vpop.permute.xlu0 %1021
      %1023 = vset.pattern.permute.xlu0 0
      %1024 = vperm.xlu0 %1023, %v283
      %v1025 = vpop.permute.xlu0 %1024
      %1026 = vset.pattern.permute.xlu0 0
      %1027 = vperm.xlu0 %1026, %v284
      %v1028 = vpop.permute.xlu0 %1027
      %1029 = vset.pattern.permute.xlu0 0
      %1030 = vperm.xlu0 %1029, %v285
      %v1031 = vpop.permute.xlu0 %1030
      %1032 = vset.pattern.permute.xlu0 0
      %1033 = vperm.xlu0 %1032, %v286
      %v1034 = vpop.permute.xlu0 %1033
      %1035 = vset.pattern.permute.xlu0 0
      %1036 = vperm.xlu0 %1035, %v287
      %v1037 = vpop.permute.xlu0 %1036
      %1038 = vset.pattern.permute.xlu0 0
      %1039 = vperm.xlu0 %1038, %v288
      %v1040 = vpop.permute.xlu0 %1039
      %1041 = vset.pattern.permute.xlu0 0
      %1042 = vperm.xlu0 %1041, %v289
      %v1043 = vpop.permute.xlu0 %1042
      %1044 = vset.pattern.permute.xlu0 0
      %1045 = vperm.xlu0 %1044, %v290
      %v1046 = vpop.permute.xlu0 %1045
      %1047 = vset.pattern.permute.xlu0 0
      %1048 = vperm.xlu0 %1047, %v291
      %v1049 = vpop.permute.xlu0 %1048
      %vm1050 = vcmp.eq.s32.totalorder %v328, %v956
      %vm1051 = vcmp.eq.s32.totalorder %v329, %v956
      %vm1052 = vcmp.eq.s32.totalorder %v328, %v959
      %vm1053 = vcmp.eq.s32.totalorder %v329, %v959
      %vm1054 = vcmp.eq.s32.totalorder %v328, %v962
      %vm1055 = vcmp.eq.s32.totalorder %v329, %v962
      %vm1056 = vcmp.eq.s32.totalorder %v328, %v965
      %vm1057 = vcmp.eq.s32.totalorder %v329, %v965
      %vm1058 = vcmp.eq.s32.totalorder %v328, %v968
      %vm1059 = vcmp.eq.s32.totalorder %v329, %v968
      %vm1060 = vcmp.eq.s32.totalorder %v328, %v971
      %vm1061 = vcmp.eq.s32.totalorder %v329, %v971
      %vm1062 = vcmp.eq.s32.totalorder %v328, %v974
      %vm1063 = vcmp.eq.s32.totalorder %v329, %v974
      %vm1064 = vcmp.eq.s32.totalorder %v328, %v977
      %vm1065 = vcmp.eq.s32.totalorder %v329, %v977
      %vm1066 = vcmp.eq.s32.totalorder %v328, %v980
      %vm1067 = vcmp.eq.s32.totalorder %v329, %v980
      %vm1068 = vcmp.eq.s32.totalorder %v328, %v983
      %vm1069 = vcmp.eq.s32.totalorder %v329, %v983
      %vm1070 = vcmp.eq.s32.totalorder %v328, %v986
      %vm1071 = vcmp.eq.s32.totalorder %v329, %v986
      %vm1072 = vcmp.eq.s32.totalorder %v328, %v989
      %vm1073 = vcmp.eq.s32.totalorder %v329, %v989
      %vm1074 = vcmp.eq.s32.totalorder %v328, %v992
      %vm1075 = vcmp.eq.s32.totalorder %v329, %v992
      %vm1076 = vcmp.eq.s32.totalorder %v328, %v995
      %vm1077 = vcmp.eq.s32.totalorder %v329, %v995
      %vm1078 = vcmp.eq.s32.totalorder %v328, %v998
      %vm1079 = vcmp.eq.s32.totalorder %v329, %v998
      %vm1080 = vcmp.eq.s32.totalorder %v328, %v1001
      %vm1081 = vcmp.eq.s32.totalorder %v329, %v1001
      %vm1082 = vcmp.eq.s32.totalorder %v328, %v1004
      %vm1083 = vcmp.eq.s32.totalorder %v329, %v1004
      %vm1084 = vcmp.eq.s32.totalorder %v328, %v1007
      %vm1085 = vcmp.eq.s32.totalorder %v329, %v1007
      %vm1086 = vcmp.eq.s32.totalorder %v328, %v1010
      %vm1087 = vcmp.eq.s32.totalorder %v329, %v1010
      %vm1088 = vcmp.eq.s32.totalorder %v328, %v1013
      %vm1089 = vcmp.eq.s32.totalorder %v329, %v1013
      %vm1090 = vcmp.eq.s32.totalorder %v328, %v1016
      %vm1091 = vcmp.eq.s32.totalorder %v329, %v1016
      %vm1092 = vcmp.eq.s32.totalorder %v328, %v1019
      %vm1093 = vcmp.eq.s32.totalorder %v329, %v1019
      %vm1094 = vcmp.eq.s32.totalorder %v328, %v1022
      %vm1095 = vcmp.eq.s32.totalorder %v329, %v1022
      %vm1096 = vcmp.eq.s32.totalorder %v328, %v1025
      %vm1097 = vcmp.eq.s32.totalorder %v329, %v1025
      %vm1098 = vcmp.eq.s32.totalorder %v328, %v1028
      %vm1099 = vcmp.eq.s32.totalorder %v329, %v1028
      %vm1100 = vcmp.eq.s32.totalorder %v328, %v1031
      %vm1101 = vcmp.eq.s32.totalorder %v329, %v1031
      %vm1102 = vcmp.eq.s32.totalorder %v328, %v1034
      %vm1103 = vcmp.eq.s32.totalorder %v329, %v1034
      %vm1104 = vcmp.eq.s32.totalorder %v328, %v1037
      %vm1105 = vcmp.eq.s32.totalorder %v329, %v1037
      %vm1106 = vcmp.eq.s32.totalorder %v328, %v1040
      %vm1107 = vcmp.eq.s32.totalorder %v329, %v1040
      %vm1108 = vcmp.eq.s32.totalorder %v328, %v1043
      %vm1109 = vcmp.eq.s32.totalorder %v329, %v1043
      %vm1110 = vcmp.eq.s32.totalorder %v328, %v1046
      %vm1111 = vcmp.eq.s32.totalorder %v329, %v1046
      %vm1112 = vcmp.eq.s32.totalorder %v328, %v1049
      %vm1113 = vcmp.eq.s32.totalorder %v329, %v1049
      %v1114 = vsel %vm1050, 1, 0
      %v1115 = vsel %vm1051, 1, 0
      %v1116 = vsel %vm1052, 1, 0
      %v1117 = vsel %vm1053, 1, 0
      %v1118 = vsel %vm1054, 1, 0
      %v1119 = vsel %vm1055, 1, 0
      %v1120 = vsel %vm1056, 1, 0
      %v1121 = vsel %vm1057, 1, 0
      %v1122 = vsel %vm1058, 1, 0
      %v1123 = vsel %vm1059, 1, 0
      %v1124 = vsel %vm1060, 1, 0
      %v1125 = vsel %vm1061, 1, 0
      %v1126 = vsel %vm1062, 1, 0
      %v1127 = vsel %vm1063, 1, 0
      %v1128 = vsel %vm1064, 1, 0
      %v1129 = vsel %vm1065, 1, 0
      %v1130 = vsel %vm1066, 1, 0
      %v1131 = vsel %vm1067, 1, 0
      %v1132 = vsel %vm1068, 1, 0
      %v1133 = vsel %vm1069, 1, 0
      %v1134 = vsel %vm1070, 1, 0
      %v1135 = vsel %vm1071, 1, 0
      %v1136 = vsel %vm1072, 1, 0
      %v1137 = vsel %vm1073, 1, 0
      %v1138 = vsel %vm1074, 1, 0
      %v1139 = vsel %vm1075, 1, 0
      %v1140 = vsel %vm1076, 1, 0
      %v1141 = vsel %vm1077, 1, 0
      %v1142 = vsel %vm1078, 1, 0
      %v1143 = vsel %vm1079, 1, 0
      %v1144 = vsel %vm1080, 1, 0
      %v1145 = vsel %vm1081, 1, 0
      %v1146 = vsel %vm1082, 1, 0
      %v1147 = vsel %vm1083, 1, 0
      %v1148 = vsel %vm1084, 1, 0
      %v1149 = vsel %vm1085, 1, 0
      %v1150 = vsel %vm1086, 1, 0
      %v1151 = vsel %vm1087, 1, 0
      %v1152 = vsel %vm1088, 1, 0
      %v1153 = vsel %vm1089, 1, 0
      %v1154 = vsel %vm1090, 1, 0
      %v1155 = vsel %vm1091, 1, 0
      %v1156 = vsel %vm1092, 1, 0
      %v1157 = vsel %vm1093, 1, 0
      %v1158 = vsel %vm1094, 1, 0
      %v1159 = vsel %vm1095, 1, 0
      %v1160 = vsel %vm1096, 1, 0
      %v1161 = vsel %vm1097, 1, 0
      %v1162 = vsel %vm1098, 1, 0
      %v1163 = vsel %vm1099, 1, 0
      %v1164 = vsel %vm1100, 1, 0
      %v1165 = vsel %vm1101, 1, 0
      %v1166 = vsel %vm1102, 1, 0
      %v1167 = vsel %vm1103, 1, 0
      %v1168 = vsel %vm1104, 1, 0
      %v1169 = vsel %vm1105, 1, 0
      %v1170 = vsel %vm1106, 1, 0
      %v1171 = vsel %vm1107, 1, 0
      %v1172 = vsel %vm1108, 1, 0
      %v1173 = vsel %vm1109, 1, 0
      %v1174 = vsel %vm1110, 1, 0
      %v1175 = vsel %vm1111, 1, 0
      %v1176 = vsel %vm1112, 1, 0
      %v1177 = vsel %vm1113, 1, 0
      %v1178 = vcvt.s32.f32 %v1114
      %v1179 = vcvt.s32.f32 %v1115
      %v1180 = vcvt.s32.f32 %v1116
      %v1181 = vcvt.s32.f32 %v1117
      %v1182 = vcvt.s32.f32 %v1118
      %v1183 = vcvt.s32.f32 %v1119
      %v1184 = vcvt.s32.f32 %v1120
      %v1185 = vcvt.s32.f32 %v1121
      %v1186 = vcvt.s32.f32 %v1122
      %v1187 = vcvt.s32.f32 %v1123
      %v1188 = vcvt.s32.f32 %v1124
      %v1189 = vcvt.s32.f32 %v1125
      %v1190 = vcvt.s32.f32 %v1126
      %v1191 = vcvt.s32.f32 %v1127
      %v1192 = vcvt.s32.f32 %v1128
      %v1193 = vcvt.s32.f32 %v1129
      %v1194 = vcvt.s32.f32 %v1130
      %v1195 = vcvt.s32.f32 %v1131
      %v1196 = vcvt.s32.f32 %v1132
      %v1197 = vcvt.s32.f32 %v1133
      %v1198 = vcvt.s32.f32 %v1134
      %v1199 = vcvt.s32.f32 %v1135
      %v1200 = vcvt.s32.f32 %v1136
      %v1201 = vcvt.s32.f32 %v1137
      %v1202 = vcvt.s32.f32 %v1138
      %v1203 = vcvt.s32.f32 %v1139
      %v1204 = vcvt.s32.f32 %v1140
      %v1205 = vcvt.s32.f32 %v1141
      %v1206 = vcvt.s32.f32 %v1142
      %v1207 = vcvt.s32.f32 %v1143
      %v1208 = vcvt.s32.f32 %v1144
      %v1209 = vcvt.s32.f32 %v1145
      %v1210 = vcvt.s32.f32 %v1146
      %v1211 = vcvt.s32.f32 %v1147
      %v1212 = vcvt.s32.f32 %v1148
      %v1213 = vcvt.s32.f32 %v1149
      %v1214 = vcvt.s32.f32 %v1150
      %v1215 = vcvt.s32.f32 %v1151
      %v1216 = vcvt.s32.f32 %v1152
      %v1217 = vcvt.s32.f32 %v1153
      %v1218 = vcvt.s32.f32 %v1154
      %v1219 = vcvt.s32.f32 %v1155
      %v1220 = vcvt.s32.f32 %v1156
      %v1221 = vcvt.s32.f32 %v1157
      %v1222 = vcvt.s32.f32 %v1158
      %v1223 = vcvt.s32.f32 %v1159
      %v1224 = vcvt.s32.f32 %v1160
      %v1225 = vcvt.s32.f32 %v1161
      %v1226 = vcvt.s32.f32 %v1162
      %v1227 = vcvt.s32.f32 %v1163
      %v1228 = vcvt.s32.f32 %v1164
      %v1229 = vcvt.s32.f32 %v1165
      %v1230 = vcvt.s32.f32 %v1166
      %v1231 = vcvt.s32.f32 %v1167
      %v1232 = vcvt.s32.f32 %v1168
      %v1233 = vcvt.s32.f32 %v1169
      %v1234 = vcvt.s32.f32 %v1170
      %v1235 = vcvt.s32.f32 %v1171
      %v1236 = vcvt.s32.f32 %v1172
      %v1237 = vcvt.s32.f32 %v1173
      %v1238 = vcvt.s32.f32 %v1174
      %v1239 = vcvt.s32.f32 %v1175
      %v1240 = vcvt.s32.f32 %v1176
      %v1241 = vcvt.s32.f32 %v1177
      %1242 = vset.pattern.permute.xlu0 1
      %1243 = vperm.xlu0 %1242, %v260
      %v1244 = vpop.permute.xlu0 %1243
      %1245 = vset.pattern.permute.xlu0 1
      %1246 = vperm.xlu0 %1245, %v261
      %v1247 = vpop.permute.xlu0 %1246
      %1248 = vset.pattern.permute.xlu0 1
      %1249 = vperm.xlu0 %1248, %v262
      %v1250 = vpop.permute.xlu0 %1249
      %1251 = vset.pattern.permute.xlu0 1
      %1252 = vperm.xlu0 %1251, %v263
      %v1253 = vpop.permute.xlu0 %1252
      %1254 = vset.pattern.permute.xlu0 1
      %1255 = vperm.xlu0 %1254, %v264
      %v1256 = vpop.permute.xlu0 %1255
      %1257 = vset.pattern.permute.xlu0 1
      %1258 = vperm.xlu0 %1257, %v265
      %v1259 = vpop.permute.xlu0 %1258
      %1260 = vset.pattern.permute.xlu0 1
      %1261 = vperm.xlu0 %1260, %v266
      %v1262 = vpop.permute.xlu0 %1261
      %1263 = vset.pattern.permute.xlu0 1
      %1264 = vperm.xlu0 %1263, %v267
      %v1265 = vpop.permute.xlu0 %1264
      %1266 = vset.pattern.permute.xlu0 1
      %1267 = vperm.xlu0 %1266, %v268
      %v1268 = vpop.permute.xlu0 %1267
      %1269 = vset.pattern.permute.xlu0 1
      %1270 = vperm.xlu0 %1269, %v269
      %v1271 = vpop.permute.xlu0 %1270
      %1272 = vset.pattern.permute.xlu0 1
      %1273 = vperm.xlu0 %1272, %v270
      %v1274 = vpop.permute.xlu0 %1273
      %1275 = vset.pattern.permute.xlu0 1
      %1276 = vperm.xlu0 %1275, %v271
      %v1277 = vpop.permute.xlu0 %1276
      %1278 = vset.pattern.permute.xlu0 1
      %1279 = vperm.xlu0 %1278, %v272
      %v1280 = vpop.permute.xlu0 %1279
      %1281 = vset.pattern.permute.xlu0 1
      %1282 = vperm.xlu0 %1281, %v273
      %v1283 = vpop.permute.xlu0 %1282
      %1284 = vset.pattern.permute.xlu0 1
      %1285 = vperm.xlu0 %1284, %v274
      %v1286 = vpop.permute.xlu0 %1285
      %1287 = vset.pattern.permute.xlu0 1
      %1288 = vperm.xlu0 %1287, %v275
      %v1289 = vpop.permute.xlu0 %1288
      %1290 = vset.pattern.permute.xlu0 1
      %1291 = vperm.xlu0 %1290, %v276
      %v1292 = vpop.permute.xlu0 %1291
      %1293 = vset.pattern.permute.xlu0 1
      %1294 = vperm.xlu0 %1293, %v277
      %v1295 = vpop.permute.xlu0 %1294
      %1296 = vset.pattern.permute.xlu0 1
      %1297 = vperm.xlu0 %1296, %v278
      %v1298 = vpop.permute.xlu0 %1297
      %1299 = vset.pattern.permute.xlu0 1
      %1300 = vperm.xlu0 %1299, %v279
      %v1301 = vpop.permute.xlu0 %1300
      %1302 = vset.pattern.permute.xlu0 1
      %1303 = vperm.xlu0 %1302, %v280
      %v1304 = vpop.permute.xlu0 %1303
      %1305 = vset.pattern.permute.xlu0 1
      %1306 = vperm.xlu0 %1305, %v281
      %v1307 = vpop.permute.xlu0 %1306
      %1308 = vset.pattern.permute.xlu0 1
      %1309 = vperm.xlu0 %1308, %v282
      %v1310 = vpop.permute.xlu0 %1309
      %1311 = vset.pattern.permute.xlu0 1
      %1312 = vperm.xlu0 %1311, %v283
      %v1313 = vpop.permute.xlu0 %1312
      %1314 = vset.pattern.permute.xlu0 1
      %1315 = vperm.xlu0 %1314, %v284
      %v1316 = vpop.permute.xlu0 %1315
      %1317 = vset.pattern.permute.xlu0 1
      %1318 = vperm.xlu0 %1317, %v285
      %v1319 = vpop.permute.xlu0 %1318
      %1320 = vset.pattern.permute.xlu0 1
      %1321 = vperm.xlu0 %1320, %v286
      %v1322 = vpop.permute.xlu0 %1321
      %1323 = vset.pattern.permute.xlu0 1
      %1324 = vperm.xlu0 %1323, %v287
      %v1325 = vpop.permute.xlu0 %1324
      %1326 = vset.pattern.permute.xlu0 1
      %1327 = vperm.xlu0 %1326, %v288
      %v1328 = vpop.permute.xlu0 %1327
      %1329 = vset.pattern.permute.xlu0 1
      %1330 = vperm.xlu0 %1329, %v289
      %v1331 = vpop.permute.xlu0 %1330
      %1332 = vset.pattern.permute.xlu0 1
      %1333 = vperm.xlu0 %1332, %v290
      %v1334 = vpop.permute.xlu0 %1333
      %1335 = vset.pattern.permute.xlu0 1
      %1336 = vperm.xlu0 %1335, %v291
      %v1337 = vpop.permute.xlu0 %1336
      %vm1338 = vcmp.eq.s32.totalorder %v328, %v1244
      %vm1339 = vcmp.eq.s32.totalorder %v329, %v1244
      %vm1340 = vcmp.eq.s32.totalorder %v328, %v1247
      %vm1341 = vcmp.eq.s32.totalorder %v329, %v1247
      %vm1342 = vcmp.eq.s32.totalorder %v328, %v1250
      %vm1343 = vcmp.eq.s32.totalorder %v329, %v1250
      %vm1344 = vcmp.eq.s32.totalorder %v328, %v1253
      %vm1345 = vcmp.eq.s32.totalorder %v329, %v1253
      %vm1346 = vcmp.eq.s32.totalorder %v328, %v1256
      %vm1347 = vcmp.eq.s32.totalorder %v329, %v1256
      %vm1348 = vcmp.eq.s32.totalorder %v328, %v1259
      %vm1349 = vcmp.eq.s32.totalorder %v329, %v1259
      %vm1350 = vcmp.eq.s32.totalorder %v328, %v1262
      %vm1351 = vcmp.eq.s32.totalorder %v329, %v1262
      %vm1352 = vcmp.eq.s32.totalorder %v328, %v1265
      %vm1353 = vcmp.eq.s32.totalorder %v329, %v1265
      %vm1354 = vcmp.eq.s32.totalorder %v328, %v1268
      %vm1355 = vcmp.eq.s32.totalorder %v329, %v1268
      %vm1356 = vcmp.eq.s32.totalorder %v328, %v1271
      %vm1357 = vcmp.eq.s32.totalorder %v329, %v1271
      %vm1358 = vcmp.eq.s32.totalorder %v328, %v1274
      %vm1359 = vcmp.eq.s32.totalorder %v329, %v1274
      %vm1360 = vcmp.eq.s32.totalorder %v328, %v1277
      %vm1361 = vcmp.eq.s32.totalorder %v329, %v1277
      %vm1362 = vcmp.eq.s32.totalorder %v328, %v1280
      %vm1363 = vcmp.eq.s32.totalorder %v329, %v1280
      %vm1364 = vcmp.eq.s32.totalorder %v328, %v1283
      %vm1365 = vcmp.eq.s32.totalorder %v329, %v1283
      %vm1366 = vcmp.eq.s32.totalorder %v328, %v1286
      %vm1367 = vcmp.eq.s32.totalorder %v329, %v1286
      %vm1368 = vcmp.eq.s32.totalorder %v328, %v1289
      %vm1369 = vcmp.eq.s32.totalorder %v329, %v1289
      %vm1370 = vcmp.eq.s32.totalorder %v328, %v1292
      %vm1371 = vcmp.eq.s32.totalorder %v329, %v1292
      %vm1372 = vcmp.eq.s32.totalorder %v328, %v1295
      %vm1373 = vcmp.eq.s32.totalorder %v329, %v1295
      %vm1374 = vcmp.eq.s32.totalorder %v328, %v1298
      %vm1375 = vcmp.eq.s32.totalorder %v329, %v1298
      %vm1376 = vcmp.eq.s32.totalorder %v328, %v1301
      %vm1377 = vcmp.eq.s32.totalorder %v329, %v1301
      %vm1378 = vcmp.eq.s32.totalorder %v328, %v1304
      %vm1379 = vcmp.eq.s32.totalorder %v329, %v1304
      %vm1380 = vcmp.eq.s32.totalorder %v328, %v1307
      %vm1381 = vcmp.eq.s32.totalorder %v329, %v1307
      %vm1382 = vcmp.eq.s32.totalorder %v328, %v1310
      %vm1383 = vcmp.eq.s32.totalorder %v329, %v1310
      %vm1384 = vcmp.eq.s32.totalorder %v328, %v1313
      %vm1385 = vcmp.eq.s32.totalorder %v329, %v1313
      %vm1386 = vcmp.eq.s32.totalorder %v328, %v1316
      %vm1387 = vcmp.eq.s32.totalorder %v329, %v1316
      %vm1388 = vcmp.eq.s32.totalorder %v328, %v1319
      %vm1389 = vcmp.eq.s32.totalorder %v329, %v1319
      %vm1390 = vcmp.eq.s32.totalorder %v328, %v1322
      %vm1391 = vcmp.eq.s32.totalorder %v329, %v1322
      %vm1392 = vcmp.eq.s32.totalorder %v328, %v1325
      %vm1393 = vcmp.eq.s32.totalorder %v329, %v1325
      %vm1394 = vcmp.eq.s32.totalorder %v328, %v1328
      %vm1395 = vcmp.eq.s32.totalorder %v329, %v1328
      %vm1396 = vcmp.eq.s32.totalorder %v328, %v1331
      %vm1397 = vcmp.eq.s32.totalorder %v329, %v1331
      %vm1398 = vcmp.eq.s32.totalorder %v328, %v1334
      %vm1399 = vcmp.eq.s32.totalorder %v329, %v1334
      %vm1400 = vcmp.eq.s32.totalorder %v328, %v1337
      %vm1401 = vcmp.eq.s32.totalorder %v329, %v1337
      %v1402 = vsel %vm1338, 1, 0
      %v1403 = vsel %vm1339, 1, 0
      %v1404 = vsel %vm1340, 1, 0
      %v1405 = vsel %vm1341, 1, 0
      %v1406 = vsel %vm1342, 1, 0
      %v1407 = vsel %vm1343, 1, 0
      %v1408 = vsel %vm1344, 1, 0
      %v1409 = vsel %vm1345, 1, 0
      %v1410 = vsel %vm1346, 1, 0
      %v1411 = vsel %vm1347, 1, 0
      %v1412 = vsel %vm1348, 1, 0
      %v1413 = vsel %vm1349, 1, 0
      %v1414 = vsel %vm1350, 1, 0
      %v1415 = vsel %vm1351, 1, 0
      %v1416 = vsel %vm1352, 1, 0
      %v1417 = vsel %vm1353, 1, 0
      %v1418 = vsel %vm1354, 1, 0
      %v1419 = vsel %vm1355, 1, 0
      %v1420 = vsel %vm1356, 1, 0
      %v1421 = vsel %vm1357, 1, 0
      %v1422 = vsel %vm1358, 1, 0
      %v1423 = vsel %vm1359, 1, 0
      %v1424 = vsel %vm1360, 1, 0
      %v1425 = vsel %vm1361, 1, 0
      %v1426 = vsel %vm1362, 1, 0
      %v1427 = vsel %vm1363, 1, 0
      %v1428 = vsel %vm1364, 1, 0
      %v1429 = vsel %vm1365, 1, 0
      %v1430 = vsel %vm1366, 1, 0
      %v1431 = vsel %vm1367, 1, 0
      %v1432 = vsel %vm1368, 1, 0
      %v1433 = vsel %vm1369, 1, 0
      %v1434 = vsel %vm1370, 1, 0
      %v1435 = vsel %vm1371, 1, 0
      %v1436 = vsel %vm1372, 1, 0
      %v1437 = vsel %vm1373, 1, 0
      %v1438 = vsel %vm1374, 1, 0
      %v1439 = vsel %vm1375, 1, 0
      %v1440 = vsel %vm1376, 1, 0
      %v1441 = vsel %vm1377, 1, 0
      %v1442 = vsel %vm1378, 1, 0
      %v1443 = vsel %vm1379, 1, 0
      %v1444 = vsel %vm1380, 1, 0
      %v1445 = vsel %vm1381, 1, 0
      %v1446 = vsel %vm1382, 1, 0
      %v1447 = vsel %vm1383, 1, 0
      %v1448 = vsel %vm1384, 1, 0
      %v1449 = vsel %vm1385, 1, 0
      %v1450 = vsel %vm1386, 1, 0
      %v1451 = vsel %vm1387, 1, 0
      %v1452 = vsel %vm1388, 1, 0
      %v1453 = vsel %vm1389, 1, 0
      %v1454 = vsel %vm1390, 1, 0
      %v1455 = vsel %vm1391, 1, 0
      %v1456 = vsel %vm1392, 1, 0
      %v1457 = vsel %vm1393, 1, 0
      %v1458 = vsel %vm1394, 1, 0
      %v1459 = vsel %vm1395, 1, 0
      %v1460 = vsel %vm1396, 1, 0
      %v1461 = vsel %vm1397, 1, 0
      %v1462 = vsel %vm1398, 1, 0
      %v1463 = vsel %vm1399, 1, 0
      %v1464 = vsel %vm1400, 1, 0
      %v1465 = vsel %vm1401, 1, 0
      %v1466 = vcvt.s32.f32 %v1402
      %v1467 = vcvt.s32.f32 %v1403
      %v1468 = vcvt.s32.f32 %v1404
      %v1469 = vcvt.s32.f32 %v1405
      %v1470 = vcvt.s32.f32 %v1406
      %v1471 = vcvt.s32.f32 %v1407
      %v1472 = vcvt.s32.f32 %v1408
      %v1473 = vcvt.s32.f32 %v1409
      %v1474 = vcvt.s32.f32 %v1410
      %v1475 = vcvt.s32.f32 %v1411
      %v1476 = vcvt.s32.f32 %v1412
      %v1477 = vcvt.s32.f32 %v1413
      %v1478 = vcvt.s32.f32 %v1414
      %v1479 = vcvt.s32.f32 %v1415
      %v1480 = vcvt.s32.f32 %v1416
      %v1481 = vcvt.s32.f32 %v1417
      %v1482 = vcvt.s32.f32 %v1418
      %v1483 = vcvt.s32.f32 %v1419
      %v1484 = vcvt.s32.f32 %v1420
      %v1485 = vcvt.s32.f32 %v1421
      %v1486 = vcvt.s32.f32 %v1422
      %v1487 = vcvt.s32.f32 %v1423
      %v1488 = vcvt.s32.f32 %v1424
      %v1489 = vcvt.s32.f32 %v1425
      %v1490 = vcvt.s32.f32 %v1426
      %v1491 = vcvt.s32.f32 %v1427
      %v1492 = vcvt.s32.f32 %v1428
      %v1493 = vcvt.s32.f32 %v1429
      %v1494 = vcvt.s32.f32 %v1430
      %v1495 = vcvt.s32.f32 %v1431
      %v1496 = vcvt.s32.f32 %v1432
      %v1497 = vcvt.s32.f32 %v1433
      %v1498 = vcvt.s32.f32 %v1434
      %v1499 = vcvt.s32.f32 %v1435
      %v1500 = vcvt.s32.f32 %v1436
      %v1501 = vcvt.s32.f32 %v1437
      %v1502 = vcvt.s32.f32 %v1438
      %v1503 = vcvt.s32.f32 %v1439
      %v1504 = vcvt.s32.f32 %v1440
      %v1505 = vcvt.s32.f32 %v1441
      %v1506 = vcvt.s32.f32 %v1442
      %v1507 = vcvt.s32.f32 %v1443
      %v1508 = vcvt.s32.f32 %v1444
      %v1509 = vcvt.s32.f32 %v1445
      %v1510 = vcvt.s32.f32 %v1446
      %v1511 = vcvt.s32.f32 %v1447
      %v1512 = vcvt.s32.f32 %v1448
      %v1513 = vcvt.s32.f32 %v1449
      %v1514 = vcvt.s32.f32 %v1450
      %v1515 = vcvt.s32.f32 %v1451
      %v1516 = vcvt.s32.f32 %v1452
      %v1517 = vcvt.s32.f32 %v1453
      %v1518 = vcvt.s32.f32 %v1454
      %v1519 = vcvt.s32.f32 %v1455
      %v1520 = vcvt.s32.f32 %v1456
      %v1521 = vcvt.s32.f32 %v1457
      %v1522 = vcvt.s32.f32 %v1458
      %v1523 = vcvt.s32.f32 %v1459
      %v1524 = vcvt.s32.f32 %v1460
      %v1525 = vcvt.s32.f32 %v1461
      %v1526 = vcvt.s32.f32 %v1462
      %v1527 = vcvt.s32.f32 %v1463
      %v1528 = vcvt.s32.f32 %v1464
      %v1529 = vcvt.s32.f32 %v1465
      %1530 = vset.pattern.permute.xlu0 2
      %1531 = vperm.xlu0 %1530, %v260
      %v1532 = vpop.permute.xlu0 %1531
      %1533 = vset.pattern.permute.xlu0 2
      %1534 = vperm.xlu0 %1533, %v261
      %v1535 = vpop.permute.xlu0 %1534
      %1536 = vset.pattern.permute.xlu0 2
      %1537 = vperm.xlu0 %1536, %v262
      %v1538 = vpop.permute.xlu0 %1537
      %1539 = vset.pattern.permute.xlu0 2
      %1540 = vperm.xlu0 %1539, %v263
      %v1541 = vpop.permute.xlu0 %1540
      %1542 = vset.pattern.permute.xlu0 2
      %1543 = vperm.xlu0 %1542, %v264
      %v1544 = vpop.permute.xlu0 %1543
      %1545 = vset.pattern.permute.xlu0 2
      %1546 = vperm.xlu0 %1545, %v265
      %v1547 = vpop.permute.xlu0 %1546
      %1548 = vset.pattern.permute.xlu0 2
      %1549 = vperm.xlu0 %1548, %v266
      %v1550 = vpop.permute.xlu0 %1549
      %1551 = vset.pattern.permute.xlu0 2
      %1552 = vperm.xlu0 %1551, %v267
      %v1553 = vpop.permute.xlu0 %1552
      %1554 = vset.pattern.permute.xlu0 2
      %1555 = vperm.xlu0 %1554, %v268
      %v1556 = vpop.permute.xlu0 %1555
      %1557 = vset.pattern.permute.xlu0 2
      %1558 = vperm.xlu0 %1557, %v269
      %v1559 = vpop.permute.xlu0 %1558
      %1560 = vset.pattern.permute.xlu0 2
      %1561 = vperm.xlu0 %1560, %v270
      %v1562 = vpop.permute.xlu0 %1561
      %1563 = vset.pattern.permute.xlu0 2
      %1564 = vperm.xlu0 %1563, %v271
      %v1565 = vpop.permute.xlu0 %1564
      %1566 = vset.pattern.permute.xlu0 2
      %1567 = vperm.xlu0 %1566, %v272
      %v1568 = vpop.permute.xlu0 %1567
      %1569 = vset.pattern.permute.xlu0 2
      %1570 = vperm.xlu0 %1569, %v273
      %v1571 = vpop.permute.xlu0 %1570
      %1572 = vset.pattern.permute.xlu0 2
      %1573 = vperm.xlu0 %1572, %v274
      %v1574 = vpop.permute.xlu0 %1573
      %1575 = vset.pattern.permute.xlu0 2
      %1576 = vperm.xlu0 %1575, %v275
      %v1577 = vpop.permute.xlu0 %1576
      %1578 = vset.pattern.permute.xlu0 2
      %1579 = vperm.xlu0 %1578, %v276
      %v1580 = vpop.permute.xlu0 %1579
      %1581 = vset.pattern.permute.xlu0 2
      %1582 = vperm.xlu0 %1581, %v277
      %v1583 = vpop.permute.xlu0 %1582
      %1584 = vset.pattern.permute.xlu0 2
      %1585 = vperm.xlu0 %1584, %v278
      %v1586 = vpop.permute.xlu0 %1585
      %1587 = vset.pattern.permute.xlu0 2
      %1588 = vperm.xlu0 %1587, %v279
      %v1589 = vpop.permute.xlu0 %1588
      %1590 = vset.pattern.permute.xlu0 2
      %1591 = vperm.xlu0 %1590, %v280
      %v1592 = vpop.permute.xlu0 %1591
      %1593 = vset.pattern.permute.xlu0 2
      %1594 = vperm.xlu0 %1593, %v281
      %v1595 = vpop.permute.xlu0 %1594
      %1596 = vset.pattern.permute.xlu0 2
      %1597 = vperm.xlu0 %1596, %v282
      %v1598 = vpop.permute.xlu0 %1597
      %1599 = vset.pattern.permute.xlu0 2
      %1600 = vperm.xlu0 %1599, %v283
      %v1601 = vpop.permute.xlu0 %1600
      %1602 = vset.pattern.permute.xlu0 2
      %1603 = vperm.xlu0 %1602, %v284
      %v1604 = vpop.permute.xlu0 %1603
      %1605 = vset.pattern.permute.xlu0 2
      %1606 = vperm.xlu0 %1605, %v285
      %v1607 = vpop.permute.xlu0 %1606
      %1608 = vset.pattern.permute.xlu0 2
      %1609 = vperm.xlu0 %1608, %v286
      %v1610 = vpop.permute.xlu0 %1609
      %1611 = vset.pattern.permute.xlu0 2
      %1612 = vperm.xlu0 %1611, %v287
      %v1613 = vpop.permute.xlu0 %1612
      %1614 = vset.pattern.permute.xlu0 2
      %1615 = vperm.xlu0 %1614, %v288
      %v1616 = vpop.permute.xlu0 %1615
      %1617 = vset.pattern.permute.xlu0 2
      %1618 = vperm.xlu0 %1617, %v289
      %v1619 = vpop.permute.xlu0 %1618
      %1620 = vset.pattern.permute.xlu0 2
      %1621 = vperm.xlu0 %1620, %v290
      %v1622 = vpop.permute.xlu0 %1621
      %1623 = vset.pattern.permute.xlu0 2
      %1624 = vperm.xlu0 %1623, %v291
      %v1625 = vpop.permute.xlu0 %1624
      %vm1626 = vcmp.eq.s32.totalorder %v328, %v1532
      %vm1627 = vcmp.eq.s32.totalorder %v329, %v1532
      %vm1628 = vcmp.eq.s32.totalorder %v328, %v1535
      %vm1629 = vcmp.eq.s32.totalorder %v329, %v1535
      %vm1630 = vcmp.eq.s32.totalorder %v328, %v1538
      %vm1631 = vcmp.eq.s32.totalorder %v329, %v1538
      %vm1632 = vcmp.eq.s32.totalorder %v328, %v1541
      %vm1633 = vcmp.eq.s32.totalorder %v329, %v1541
      %vm1634 = vcmp.eq.s32.totalorder %v328, %v1544
      %vm1635 = vcmp.eq.s32.totalorder %v329, %v1544
      %vm1636 = vcmp.eq.s32.totalorder %v328, %v1547
      %vm1637 = vcmp.eq.s32.totalorder %v329, %v1547
      %vm1638 = vcmp.eq.s32.totalorder %v328, %v1550
      %vm1639 = vcmp.eq.s32.totalorder %v329, %v1550
      %vm1640 = vcmp.eq.s32.totalorder %v328, %v1553
      %vm1641 = vcmp.eq.s32.totalorder %v329, %v1553
      %vm1642 = vcmp.eq.s32.totalorder %v328, %v1556
      %vm1643 = vcmp.eq.s32.totalorder %v329, %v1556
      %vm1644 = vcmp.eq.s32.totalorder %v328, %v1559
      %vm1645 = vcmp.eq.s32.totalorder %v329, %v1559
      %vm1646 = vcmp.eq.s32.totalorder %v328, %v1562
      %vm1647 = vcmp.eq.s32.totalorder %v329, %v1562
      %vm1648 = vcmp.eq.s32.totalorder %v328, %v1565
      %vm1649 = vcmp.eq.s32.totalorder %v329, %v1565
      %vm1650 = vcmp.eq.s32.totalorder %v328, %v1568
      %vm1651 = vcmp.eq.s32.totalorder %v329, %v1568
      %vm1652 = vcmp.eq.s32.totalorder %v328, %v1571
      %vm1653 = vcmp.eq.s32.totalorder %v329, %v1571
      %vm1654 = vcmp.eq.s32.totalorder %v328, %v1574
      %vm1655 = vcmp.eq.s32.totalorder %v329, %v1574
      %vm1656 = vcmp.eq.s32.totalorder %v328, %v1577
      %vm1657 = vcmp.eq.s32.totalorder %v329, %v1577
      %vm1658 = vcmp.eq.s32.totalorder %v328, %v1580
      %vm1659 = vcmp.eq.s32.totalorder %v329, %v1580
      %vm1660 = vcmp.eq.s32.totalorder %v328, %v1583
      %vm1661 = vcmp.eq.s32.totalorder %v329, %v1583
      %vm1662 = vcmp.eq.s32.totalorder %v328, %v1586
      %vm1663 = vcmp.eq.s32.totalorder %v329, %v1586
      %vm1664 = vcmp.eq.s32.totalorder %v328, %v1589
      %vm1665 = vcmp.eq.s32.totalorder %v329, %v1589
      %vm1666 = vcmp.eq.s32.totalorder %v328, %v1592
      %vm1667 = vcmp.eq.s32.totalorder %v329, %v1592
      %vm1668 = vcmp.eq.s32.totalorder %v328, %v1595
      %vm1669 = vcmp.eq.s32.totalorder %v329, %v1595
      %vm1670 = vcmp.eq.s32.totalorder %v328, %v1598
      %vm1671 = vcmp.eq.s32.totalorder %v329, %v1598
      %vm1672 = vcmp.eq.s32.totalorder %v328, %v1601
      %vm1673 = vcmp.eq.s32.totalorder %v329, %v1601
      %vm1674 = vcmp.eq.s32.totalorder %v328, %v1604
      %vm1675 = vcmp.eq.s32.totalorder %v329, %v1604
      %vm1676 = vcmp.eq.s32.totalorder %v328, %v1607
      %vm1677 = vcmp.eq.s32.totalorder %v329, %v1607
      %vm1678 = vcmp.eq.s32.totalorder %v328, %v1610
      %vm1679 = vcmp.eq.s32.totalorder %v329, %v1610
      %vm1680 = vcmp.eq.s32.totalorder %v328, %v1613
      %vm1681 = vcmp.eq.s32.totalorder %v329, %v1613
      %vm1682 = vcmp.eq.s32.totalorder %v328, %v1616
      %vm1683 = vcmp.eq.s32.totalorder %v329, %v1616
      %vm1684 = vcmp.eq.s32.totalorder %v328, %v1619
      %vm1685 = vcmp.eq.s32.totalorder %v329, %v1619
      %vm1686 = vcmp.eq.s32.totalorder %v328, %v1622
      %vm1687 = vcmp.eq.s32.totalorder %v329, %v1622
      %vm1688 = vcmp.eq.s32.totalorder %v328, %v1625
      %vm1689 = vcmp.eq.s32.totalorder %v329, %v1625
      %v1690 = vsel %vm1626, 1, 0
      %v1691 = vsel %vm1627, 1, 0
      %v1692 = vsel %vm1628, 1, 0
      %v1693 = vsel %vm1629, 1, 0
      %v1694 = vsel %vm1630, 1, 0
      %v1695 = vsel %vm1631, 1, 0
      %v1696 = vsel %vm1632, 1, 0
      %v1697 = vsel %vm1633, 1, 0
      %v1698 = vsel %vm1634, 1, 0
      %v1699 = vsel %vm1635, 1, 0
      %v1700 = vsel %vm1636, 1, 0
      %v1701 = vsel %vm1637, 1, 0
      %v1702 = vsel %vm1638, 1, 0
      %v1703 = vsel %vm1639, 1, 0
      %v1704 = vsel %vm1640, 1, 0
      %v1705 = vsel %vm1641, 1, 0
      %v1706 = vsel %vm1642, 1, 0
      %v1707 = vsel %vm1643, 1, 0
      %v1708 = vsel %vm1644, 1, 0
      %v1709 = vsel %vm1645, 1, 0
      %v1710 = vsel %vm1646, 1, 0
      %v1711 = vsel %vm1647, 1, 0
      %v1712 = vsel %vm1648, 1, 0
      %v1713 = vsel %vm1649, 1, 0
      %v1714 = vsel %vm1650, 1, 0
      %v1715 = vsel %vm1651, 1, 0
      %v1716 = vsel %vm1652, 1, 0
      %v1717 = vsel %vm1653, 1, 0
      %v1718 = vsel %vm1654, 1, 0
      %v1719 = vsel %vm1655, 1, 0
      %v1720 = vsel %vm1656, 1, 0
      %v1721 = vsel %vm1657, 1, 0
      %v1722 = vsel %vm1658, 1, 0
      %v1723 = vsel %vm1659, 1, 0
      %v1724 = vsel %vm1660, 1, 0
      %v1725 = vsel %vm1661, 1, 0
      %v1726 = vsel %vm1662, 1, 0
      %v1727 = vsel %vm1663, 1, 0
      %v1728 = vsel %vm1664, 1, 0
      %v1729 = vsel %vm1665, 1, 0
      %v1730 = vsel %vm1666, 1, 0
      %v1731 = vsel %vm1667, 1, 0
      %v1732 = vsel %vm1668, 1, 0
      %v1733 = vsel %vm1669, 1, 0
      %v1734 = vsel %vm1670, 1, 0
      %v1735 = vsel %vm1671, 1, 0
      %v1736 = vsel %vm1672, 1, 0
      %v1737 = vsel %vm1673, 1, 0
      %v1738 = vsel %vm1674, 1, 0
      %v1739 = vsel %vm1675, 1, 0
      %v1740 = vsel %vm1676, 1, 0
      %v1741 = vsel %vm1677, 1, 0
      %v1742 = vsel %vm1678, 1, 0
      %v1743 = vsel %vm1679, 1, 0
      %v1744 = vsel %vm1680, 1, 0
      %v1745 = vsel %vm1681, 1, 0
      %v1746 = vsel %vm1682, 1, 0
      %v1747 = vsel %vm1683, 1, 0
      %v1748 = vsel %vm1684, 1, 0
      %v1749 = vsel %vm1685, 1, 0
      %v1750 = vsel %vm1686, 1, 0
      %v1751 = vsel %vm1687, 1, 0
      %v1752 = vsel %vm1688, 1, 0
      %v1753 = vsel %vm1689, 1, 0
      %v1754 = vcvt.s32.f32 %v1690
      %v1755 = vcvt.s32.f32 %v1691
      %v1756 = vcvt.s32.f32 %v1692
      %v1757 = vcvt.s32.f32 %v1693
      %v1758 = vcvt.s32.f32 %v1694
      %v1759 = vcvt.s32.f32 %v1695
      %v1760 = vcvt.s32.f32 %v1696
      %v1761 = vcvt.s32.f32 %v1697
      %v1762 = vcvt.s32.f32 %v1698
      %v1763 = vcvt.s32.f32 %v1699
      %v1764 = vcvt.s32.f32 %v1700
      %v1765 = vcvt.s32.f32 %v1701
      %v1766 = vcvt.s32.f32 %v1702
      %v1767 = vcvt.s32.f32 %v1703
      %v1768 = vcvt.s32.f32 %v1704
      %v1769 = vcvt.s32.f32 %v1705
      %v1770 = vcvt.s32.f32 %v1706
      %v1771 = vcvt.s32.f32 %v1707
      %v1772 = vcvt.s32.f32 %v1708
      %v1773 = vcvt.s32.f32 %v1709
      %v1774 = vcvt.s32.f32 %v1710
      %v1775 = vcvt.s32.f32 %v1711
      %v1776 = vcvt.s32.f32 %v1712
      %v1777 = vcvt.s32.f32 %v1713
      %v1778 = vcvt.s32.f32 %v1714
      %v1779 = vcvt.s32.f32 %v1715
      %v1780 = vcvt.s32.f32 %v1716
      %v1781 = vcvt.s32.f32 %v1717
      %v1782 = vcvt.s32.f32 %v1718
      %v1783 = vcvt.s32.f32 %v1719
      %v1784 = vcvt.s32.f32 %v1720
      %v1785 = vcvt.s32.f32 %v1721
      %v1786 = vcvt.s32.f32 %v1722
      %v1787 = vcvt.s32.f32 %v1723
      %v1788 = vcvt.s32.f32 %v1724
      %v1789 = vcvt.s32.f32 %v1725
      %v1790 = vcvt.s32.f32 %v1726
      %v1791 = vcvt.s32.f32 %v1727
      %v1792 = vcvt.s32.f32 %v1728
      %v1793 = vcvt.s32.f32 %v1729
      %v1794 = vcvt.s32.f32 %v1730
      %v1795 = vcvt.s32.f32 %v1731
      %v1796 = vcvt.s32.f32 %v1732
      %v1797 = vcvt.s32.f32 %v1733
      %v1798 = vcvt.s32.f32 %v1734
      %v1799 = vcvt.s32.f32 %v1735
      %v1800 = vcvt.s32.f32 %v1736
      %v1801 = vcvt.s32.f32 %v1737
      %v1802 = vcvt.s32.f32 %v1738
      %v1803 = vcvt.s32.f32 %v1739
      %v1804 = vcvt.s32.f32 %v1740
      %v1805 = vcvt.s32.f32 %v1741
      %v1806 = vcvt.s32.f32 %v1742
      %v1807 = vcvt.s32.f32 %v1743
      %v1808 = vcvt.s32.f32 %v1744
      %v1809 = vcvt.s32.f32 %v1745
      %v1810 = vcvt.s32.f32 %v1746
      %v1811 = vcvt.s32.f32 %v1747
      %v1812 = vcvt.s32.f32 %v1748
      %v1813 = vcvt.s32.f32 %v1749
      %v1814 = vcvt.s32.f32 %v1750
      %v1815 = vcvt.s32.f32 %v1751
      %v1816 = vcvt.s32.f32 %v1752
      %v1817 = vcvt.s32.f32 %v1753
      %v1819 = vcombine.high %v293, %v293
      %1821 = vmatprep.subr.mxu0 %v475
      %1822 = vmatpush1.msra.mxu0 %v474
      %1823 = vmatprep.subr.mxu0 %v477
      %1824 = vmatpush1.msra.mxu0 %v476
      %1825 = vmatprep.subr.mxu0 %v479
      %1826 = vmatpush1.msra.mxu0 %v478
      %1827 = vmatprep.subr.mxu0 %v481
      %1828 = vmatpush1.msra.mxu0 %v480
      %1829 = vmatprep.subr.mxu0 %v483
      %1830 = vmatpush1.msra.mxu0 %v482
      %1831 = vmatprep.subr.mxu0 %v485
      %1832 = vmatpush1.msra.mxu0 %v484
      %1833 = vmatprep.subr.mxu0 %v487
      %1834 = vmatpush1.msra.mxu0 %v486
      %1835 = vmatprep.subr.mxu0 %v489
      %1836 = vmatpush1.msra.mxu0 %v488
      %1837 = vmatprep.subr.mxu0 %v491
      %1838 = vmatpush1.msra.mxu0 %v490
      %1839 = vmatprep.subr.mxu0 %v493
      %1840 = vmatpush1.msra.mxu0 %v492
      %1841 = vmatprep.subr.mxu0 %v495
      %1842 = vmatpush1.msra.mxu0 %v494
      %1843 = vmatprep.subr.mxu0 %v497
      %1844 = vmatpush1.msra.mxu0 %v496
      %1845 = vmatprep.subr.mxu0 %v499
      %1846 = vmatpush1.msra.mxu0 %v498
      %1847 = vmatprep.subr.mxu0 %v501
      %1848 = vmatpush1.msra.mxu0 %v500
      %1849 = vmatprep.subr.mxu0 %v503
      %1850 = vmatpush1.msra.mxu0 %v502
      %1851 = vmatprep.subr.mxu0 %v505
      %1852 = vmatpush1.msra.mxu0 %v504
      %1853 = vmatprep.subr.mxu0 %v507
      %1854 = vmatpush1.msra.mxu0 %v506
      %1855 = vmatprep.subr.mxu0 %v509
      %1856 = vmatpush1.msra.mxu0 %v508
      %1857 = vmatprep.subr.mxu0 %v511
      %1858 = vmatpush1.msra.mxu0 %v510
      %1859 = vmatprep.subr.mxu0 %v513
      %1860 = vmatpush1.msra.mxu0 %v512
      %1861 = vmatprep.subr.mxu0 %v515
      %1862 = vmatpush1.msra.mxu0 %v514
      %1863 = vmatprep.subr.mxu0 %v517
      %1864 = vmatpush1.msra.mxu0 %v516
      %1865 = vmatprep.subr.mxu0 %v519
      %1866 = vmatpush1.msra.mxu0 %v518
      %1867 = vmatprep.subr.mxu0 %v521
      %1868 = vmatpush1.msra.mxu0 %v520
      %1869 = vmatprep.subr.mxu0 %v523
      %1870 = vmatpush1.msra.mxu0 %v522
      %1871 = vmatprep.subr.mxu0 %v525
      %1872 = vmatpush1.msra.mxu0 %v524
      %1873 = vmatprep.subr.mxu0 %v527
      %1874 = vmatpush1.msra.mxu0 %v526
      %1875 = vmatprep.subr.mxu0 %v529
      %1876 = vmatpush1.msra.mxu0 %v528
      %1877 = vmatprep.subr.mxu0 %v531
      %1878 = vmatpush1.msra.mxu0 %v530
      %1879 = vmatprep.subr.mxu0 %v533
      %1880 = vmatpush1.msra.mxu0 %v532
      %1881 = vmatprep.subr.mxu0 %v535
      %1882 = vmatpush1.msra.mxu0 %v534
      %1883 = vmatprep.subr.mxu0 %v537
      %1884 = vmatpush1.msra.mxu0 %v536
      %1885 = vmatprep.mubr.f32.mxu0 %v1819
      %1886 = vmatmul.mubr.f32.gmra.mrb[0].mxu0 %v293
      %v1887 = vpop.f32.mrb[0].mxu0
      %v1888 = vadd.f32 0.0, %v1887
      %v1889 = vpop.f32.mrb[0].mxu0
      %v1890 = vadd.f32 0.0, %v1889
      %1891 = vdwg.mxu0
      %1892 = vmatprep.subr.mxu0 %v683
      %1893 = vmatpush1.msra.mxu0 %v682
      %1894 = vmatprep.subr.mxu0 %v685
      %1895 = vmatpush1.msra.mxu0 %v684
      %1896 = vmatprep.subr.mxu0 %v687
      %1897 = vmatpush1.msra.mxu0 %v686
      %1898 = vmatprep.subr.mxu0 %v689
      %1899 = vmatpush1.msra.mxu0 %v688
      %1900 = vmatprep.subr.mxu0 %v691
      %1901 = vmatpush1.msra.mxu0 %v690
      %1902 = vmatprep.subr.mxu0 %v693
      %1903 = vmatpush1.msra.mxu0 %v692
      %1904 = vmatprep.subr.mxu0 %v695
      %1905 = vmatpush1.msra.mxu0 %v694
      %1906 = vmatprep.subr.mxu0 %v697
      %1907 = vmatpush1.msra.mxu0 %v696
      %1908 = vmatprep.subr.mxu0 %v699
      %1909 = vmatpush1.msra.mxu0 %v698
      %1910 = vmatprep.subr.mxu0 %v701
      %1911 = vmatpush1.msra.mxu0 %v700
      %1912 = vmatprep.subr.mxu0 %v703
      %1913 = vmatpush1.msra.mxu0 %v702
      %1914 = vmatprep.subr.mxu0 %v705
      %1915 = vmatpush1.msra.mxu0 %v704
      %1916 = vmatprep.subr.mxu0 %v707
      %1917 = vmatpush1.msra.mxu0 %v706
      %1918 = vmatprep.subr.mxu0 %v709
      %1919 = vmatpush1.msra.mxu0 %v708
      %1920 = vmatprep.subr.mxu0 %v711
      %1921 = vmatpush1.msra.mxu0 %v710
      %1922 = vmatprep.subr.mxu0 %v713
      %1923 = vmatpush1.msra.mxu0 %v712
      %1924 = vmatprep.subr.mxu0 %v715
      %1925 = vmatpush1.msra.mxu0 %v714
      %1926 = vmatprep.subr.mxu0 %v717
      %1927 = vmatpush1.msra.mxu0 %v716
      %1928 = vmatprep.subr.mxu0 %v719
      %1929 = vmatpush1.msra.mxu0 %v718
      %1930 = vmatprep.subr.mxu0 %v721
      %1931 = vmatpush1.msra.mxu0 %v720
      %1932 = vmatprep.subr.mxu0 %v723
      %1933 = vmatpush1.msra.mxu0 %v722
      %1934 = vmatprep.subr.mxu0 %v725
      %1935 = vmatpush1.msra.mxu0 %v724
      %1936 = vmatprep.subr.mxu0 %v727
      %1937 = vmatpush1.msra.mxu0 %v726
      %1938 = vmatprep.subr.mxu0 %v729
      %1939 = vmatpush1.msra.mxu0 %v728
      %1940 = vmatprep.subr.mxu0 %v731
      %1941 = vmatpush1.msra.mxu0 %v730
      %1942 = vmatprep.subr.mxu0 %v733
      %1943 = vmatpush1.msra.mxu0 %v732
      %1944 = vmatprep.subr.mxu0 %v735
      %1945 = vmatpush1.msra.mxu0 %v734
      %1946 = vmatprep.subr.mxu0 %v737
      %1947 = vmatpush1.msra.mxu0 %v736
      %1948 = vmatprep.subr.mxu0 %v739
      %1949 = vmatpush1.msra.mxu0 %v738
      %1950 = vmatprep.subr.mxu0 %v741
      %1951 = vmatpush1.msra.mxu0 %v740
      %1952 = vmatprep.subr.mxu0 %v743
      %1953 = vmatpush1.msra.mxu0 %v742
      %1954 = vmatprep.subr.mxu0 %v745
      %1955 = vmatpush1.msra.mxu0 %v744
      %1956 = vmatprep.mubr.f32.mxu0 %v1819
      %1957 = vmatmul.mubr.f32.gmra.mrb[0].mxu0 %v293
      %v1958 = vpop.f32.mrb[0].mxu0
      %v1959 = vadd.f32 0.0, %v1958
      %v1960 = vpop.f32.mrb[0].mxu0
      %v1961 = vadd.f32 0.0, %v1960
      %1962 = vdwg.mxu0
      %1963 = vmatprep.subr.mxu0 %v891
      %1964 = vmatpush1.msra.mxu0 %v890
      %1965 = vmatprep.subr.mxu0 %v893
      %1966 = vmatpush1.msra.mxu0 %v892
      %1967 = vmatprep.subr.mxu0 %v895
      %1968 = vmatpush1.msra.mxu0 %v894
      %1969 = vmatprep.subr.mxu0 %v897
      %1970 = vmatpush1.msra.mxu0 %v896
      %1971 = vmatprep.subr.mxu0 %v899
      %1972 = vmatpush1.msra.mxu0 %v898
      %1973 = vmatprep.subr.mxu0 %v901
      %1974 = vmatpush1.msra.mxu0 %v900
      %1975 = vmatprep.subr.mxu0 %v903
      %1976 = vmatpush1.msra.mxu0 %v902
      %1977 = vmatprep.subr.mxu0 %v905
      %1978 = vmatpush1.msra.mxu0 %v904
      %1979 = vmatprep.subr.mxu0 %v907
      %1980 = vmatpush1.msra.mxu0 %v906
      %1981 = vmatprep.subr.mxu0 %v909
      %1982 = vmatpush1.msra.mxu0 %v908
      %1983 = vmatprep.subr.mxu0 %v911
      %1984 = vmatpush1.msra.mxu0 %v910
      %1985 = vmatprep.subr.mxu0 %v913
      %1986 = vmatpush1.msra.mxu0 %v912
      %1987 = vmatprep.subr.mxu0 %v915
      %1988 = vmatpush1.msra.mxu0 %v914
      %1989 = vmatprep.subr.mxu0 %v917
      %1990 = vmatpush1.msra.mxu0 %v916
      %1991 = vmatprep.subr.mxu0 %v919
      %1992 = vmatpush1.msra.mxu0 %v918
      %1993 = vmatprep.subr.mxu0 %v921
      %1994 = vmatpush1.msra.mxu0 %v920
      %1995 = vmatprep.subr.mxu0 %v923
      %1996 = vmatpush1.msra.mxu0 %v922
      %1997 = vmatprep.subr.mxu0 %v925
      %1998 = vmatpush1.msra.mxu0 %v924
      %1999 = vmatprep.subr.mxu0 %v927
      %2000 = vmatpush1.msra.mxu0 %v926
      %2001 = vmatprep.subr.mxu0 %v929
      %2002 = vmatpush1.msra.mxu0 %v928
      %2003 = vmatprep.subr.mxu0 %v931
      %2004 = vmatpush1.msra.mxu0 %v930
      %2005 = vmatprep.subr.mxu0 %v933
      %2006 = vmatpush1.msra.mxu0 %v932
      %2007 = vmatprep.subr.mxu0 %v935
      %2008 = vmatpush1.msra.mxu0 %v934
      %2009 = vmatprep.subr.mxu0 %v937
      %2010 = vmatpush1.msra.mxu0 %v936
      %2011 = vmatprep.subr.mxu0 %v939
      %2012 = vmatpush1.msra.mxu0 %v938
      %2013 = vmatprep.subr.mxu0 %v941
      %2014 = vmatpush1.msra.mxu0 %v940
      %2015 = vmatprep.subr.mxu0 %v943
      %2016 = vmatpush1.msra.mxu0 %v942
      %2017 = vmatprep.subr.mxu0 %v945
      %2018 = vmatpush1.msra.mxu0 %v944
      %2019 = vmatprep.subr.mxu0 %v947
      %2020 = vmatpush1.msra.mxu0 %v946
      %2021 = vmatprep.subr.mxu0 %v949
      %2022 = vmatpush1.msra.mxu0 %v948
      %2023 = vmatprep.subr.mxu0 %v951
      %2024 = vmatpush1.msra.mxu0 %v950
      %2025 = vmatprep.subr.mxu0 %v953
      %2026 = vmatpush1.msra.mxu0 %v952
      %2027 = vmatprep.mubr.f32.mxu0 %v1819
      %2028 = vmatmul.mubr.f32.gmra.mrb[0].mxu0 %v293
      %v2029 = vpop.f32.mrb[0].mxu0
      %v2030 = vadd.f32 0.0, %v2029
      %v2031 = vpop.f32.mrb[0].mxu0
      %v2032 = vadd.f32 0.0, %v2031
      %2033 = vdwg.mxu0
      %v2034 = vsub.f32 %v1959, %v2030
      %v2035 = vsub.f32 %v1961, %v2032
      %v2036 = vmul.f32 %v2034, %v2034
      %v2037 = vmul.f32 %v2035, %v2035
      %vm2038 = vcmask 1042432
      %v2039 = vsel %vm2038, %v2036, 0.0
      %v2040 = vrot.slane %v2039, 4
      %v2041 = vadd.f32 %v2039, %v2040
      %v2042 = vrot.slane %v2041, 2
      %v2043 = vadd.f32 %v2041, %v2042
      %v2044 = vrot.slane %v2043, 1
      %v2045 = vadd.f32 %v2043, %v2044
      %v2046 = vsel %vm2038, %v2037, 0.0
      %v2047 = vrot.slane %v2046, 4
      %v2048 = vadd.f32 %v2046, %v2047
      %v2049 = vrot.slane %v2048, 2
      %v2050 = vadd.f32 %v2048, %v2049
      %v2051 = vrot.slane %v2050, 1
      %v2052 = vadd.f32 %v2050, %v2051
      %v2053 = vsub.f32 %v2030, %v1888
      %v2054 = vsub.f32 %v2032, %v1890
      %v2055 = vmul.f32 %v2053, %v2053
      %v2056 = vmul.f32 %v2054, %v2054
      %v2057 = vsel %vm2038, %v2055, 0.0
      %v2058 = vrot.slane %v2057, 4
      %v2059 = vadd.f32 %v2057, %v2058
      %v2060 = vrot.slane %v2059, 2
      %v2061 = vadd.f32 %v2059, %v2060
      %v2062 = vrot.slane %v2061, 1
      %v2063 = vadd.f32 %v2061, %v2062
      %v2064 = vsel %vm2038, %v2056, 0.0
      %v2065 = vrot.slane %v2064, 4
      %v2066 = vadd.f32 %v2064, %v2065
      %v2067 = vrot.slane %v2066, 2
      %v2068 = vadd.f32 %v2066, %v2067
      %v2069 = vrot.slane %v2068, 1
      %v2070 = vadd.f32 %v2068, %v2069
      %v2071 = vsub.f32 %v1888, %v1959
      %v2072 = vsub.f32 %v1890, %v1961
      %v2073 = vmul.f32 %v2071, %v2071
      %v2074 = vmul.f32 %v2072, %v2072
      %v2075 = vsel %vm2038, %v2073, 0.0
      %v2076 = vrot.slane %v2075, 4
      %v2077 = vadd.f32 %v2075, %v2076
      %v2078 = vrot.slane %v2077, 2
      %v2079 = vadd.f32 %v2077, %v2078
      %v2080 = vrot.slane %v2079, 1
      %v2081 = vadd.f32 %v2079, %v2080
      %v2082 = vsel %vm2038, %v2074, 0.0
      %v2083 = vrot.slane %v2082, 4
      %v2084 = vadd.f32 %v2082, %v2083
      %v2085 = vrot.slane %v2084, 2
      %v2086 = vadd.f32 %v2084, %v2085
      %v2087 = vrot.slane %v2086, 1
      %v2088 = vadd.f32 %v2086, %v2087
      %v2089 = vrsqrt.pop %v2045
      %v2090 = vmul.f32 %v2045, %v2089
      %vm2091 = vcmp.eq.f32.partialorder %v2045, inf
      %v2092 = vsel %vm2091, %v2045, %v2090
      %vm2093 = vcmp.eq.f32.partialorder %v2045, 0.0
      %v2094 = vand.u32 %v2045, 2147483648
      %v2095 = vsel %vm2093, %v2094, %v2092
      %v2096 = vrsqrt.pop %v2052
      %v2097 = vmul.f32 %v2052, %v2096
      %vm2098 = vcmp.eq.f32.partialorder %v2052, inf
      %v2099 = vsel %vm2098, %v2052, %v2097
      %vm2100 = vcmp.eq.f32.partialorder %v2052, 0.0
      %v2101 = vand.u32 %v2052, 2147483648
      %v2102 = vsel %vm2100, %v2101, %v2099
      %v2103 = vrsqrt.pop %v2063
      %v2104 = vmul.f32 %v2063, %v2103
      %vm2105 = vcmp.eq.f32.partialorder %v2063, inf
      %v2106 = vsel %vm2105, %v2063, %v2104
      %vm2107 = vcmp.eq.f32.partialorder %v2063, 0.0
      %v2108 = vand.u32 %v2063, 2147483648
      %v2109 = vsel %vm2107, %v2108, %v2106
      %v2110 = vrsqrt.pop %v2070
      %v2111 = vmul.f32 %v2070, %v2110
      %vm2112 = vcmp.eq.f32.partialorder %v2070, inf
      %v2113 = vsel %vm2112, %v2070, %v2111
      %vm2114 = vcmp.eq.f32.partialorder %v2070, 0.0
      %v2115 = vand.u32 %v2070, 2147483648
      %v2116 = vsel %vm2114, %v2115, %v2113
      %v2117 = vrsqrt.pop %v2081
      %v2118 = vmul.f32 %v2081, %v2117
      %vm2119 = vcmp.eq.f32.partialorder %v2081, inf
      %v2120 = vsel %vm2119, %v2081, %v2118
      %vm2121 = vcmp.eq.f32.partialorder %v2081, 0.0
      %v2122 = vand.u32 %v2081, 2147483648
      %v2123 = vsel %vm2121, %v2122, %v2120
      %v2124 = vrsqrt.pop %v2088
      %v2125 = vmul.f32 %v2088, %v2124
      %vm2126 = vcmp.eq.f32.partialorder %v2088, inf
      %v2127 = vsel %vm2126, %v2088, %v2125
      %vm2128 = vcmp.eq.f32.partialorder %v2088, 0.0
      %v2129 = vand.u32 %v2088, 2147483648
      %v2130 = vsel %vm2128, %v2129, %v2127
      %v2131 = vadd.f32 %v2095, %v2109
      %v2132 = vadd.f32 %v2102, %v2116
      %v2133 = vadd.f32 %v2131, %v2123
      %v2134 = vadd.f32 %v2132, %v2130
      %v2135 = vmul.f32 %v2133, 0.5
      %v2136 = vmul.f32 %v2134, 0.5
      %v2137 = vsub.f32 %v2135, %v2095
      %v2138 = vsub.f32 %v2136, %v2102
      %v2139 = vmul.f32 %v2135, %v2137
      %v2140 = vmul.f32 %v2136, %v2138
      %v2141 = vsub.f32 %v2135, %v2109
      %v2142 = vsub.f32 %v2136, %v2116
      %v2143 = vmul.f32 %v2139, %v2141
      %v2144 = vmul.f32 %v2140, %v2142
      %v2145 = vsub.f32 %v2135, %v2123
      %v2146 = vsub.f32 %v2136, %v2130
      %v2147 = vmul.f32 %v2143, %v2145
      %v2148 = vmul.f32 %v2144, %v2146
      %v2149 = vrsqrt.pop %v2147
      %v2150 = vmul.f32 %v2147, %v2149
      %vm2151 = vcmp.eq.f32.partialorder %v2147, inf
      %v2152 = vsel %vm2151, %v2147, %v2150
      %vm2153 = vcmp.eq.f32.partialorder %v2147, 0.0
      %v2154 = vand.u32 %v2147, 2147483648
      %v2155 = vsel %vm2153, %v2154, %v2152
      %v2156 = vrsqrt.pop %v2148
      %v2157 = vmul.f32 %v2148, %v2156
      %vm2158 = vcmp.eq.f32.partialorder %v2148, inf
      %v2159 = vsel %vm2158, %v2148, %v2157
      %vm2160 = vcmp.eq.f32.partialorder %v2148, 0.0
      %v2161 = vand.u32 %v2148, 2147483648
      %v2162 = vsel %vm2160, %v2161, %v2159
      %v2163 = vmul.f32 %v2155, 2.0
      %v2164 = vmul.f32 %v2162, 2.0
      %v2165 = vadd.f32 %v2063, %v2081
      %v2166 = vadd.f32 %v2070, %v2088
      %v2167 = vsub.f32 %v2165, %v2045
      %v2168 = vsub.f32 %v2166, %v2052
      %v2169 = vrcp.pop %v2163
      %v2170 = vmul.f32 %v2167, %v2169
      %v2171 = vrcp.pop %v2164
      %v2172 = vmul.f32 %v2168, %v2171
      %v2173 = vmul.f32 %v2170, 0.25
      %v2174 = vmul.f32 %v2172, 0.25
      %v2175 = vadd.f32 %v2045, %v2081
      %v2176 = vadd.f32 %v2052, %v2088
      %v2177 = vsub.f32 %v2175, %v2063
      %v2178 = vsub.f32 %v2176, %v2070
      %v2179 = vmul.f32 %v2177, %v2169
      %v2180 = vmul.f32 %v2178, %v2171
      %v2181 = vmul.f32 %v2179, 0.25
      %v2182 = vmul.f32 %v2180, 0.25
      %v2183 = vadd.f32 %v2045, %v2063
      %v2184 = vadd.f32 %v2052, %v2070
      %v2185 = vsub.f32 %v2183, %v2081
      %v2186 = vsub.f32 %v2184, %v2088
      %v2187 = vmul.f32 %v2185, %v2169
      %v2188 = vmul.f32 %v2186, %v2171
      %v2189 = vmul.f32 %v2187, 0.25
      %v2190 = vmul.f32 %v2188, 0.25
      %s2191 = smul.u32 %s19, 256
      %v2192 = vstv %s2191
      %v2193 = vadd.s32 %v2192, %v328
      %v2194 = vadd.s32 %v2192, %v329
      %vm2195 = vcmp.lt.s32.totalorder %v2193, 450
      %vm2196 = vcmp.lt.s32.totalorder %v2194, 450
      %v2197 = vsel %vm2195, %v2173, 0.0
      %v2198 = vsel %vm2196, %v2174, 0.0
      %v2199 = vsel %vm2195, %v2181, 0.0
      %v2200 = vsel %vm2196, %v2182, 0.0
      %v2201 = vsel %vm2195, %v2189, 0.0
      %v2202 = vsel %vm2196, %v2190, 0.0
      %v2203 = vmul.f32 %v2199, %v2030
      %v2204 = vmul.f32 %v2200, %v2032
      %v2205 = vmul.f32 %v2201, %v1959
      %v2206 = vmul.f32 %v2202, %v1961
      %v2207 = vadd.f32 %v2203, %v2205
      %v2208 = vadd.f32 %v2204, %v2206
      %v2209 = vadd.f32 %v2199, %v2201
      %v2210 = vadd.f32 %v2200, %v2202
      %v2211 = vsel %vm2038, %v2207, %v2209
      %v2212 = vsel %vm2038, %v2208, %v2210
      %v2213 = vmul.f32 %v2197, %v2030
      %v2214 = vmul.f32 %v2198, %v2032
      %v2215 = vmul.f32 %v2201, %v1888
      %v2216 = vmul.f32 %v2202, %v1890
      %v2217 = vadd.f32 %v2213, %v2215
      %v2218 = vadd.f32 %v2214, %v2216
      %v2219 = vadd.f32 %v2197, %v2201
      %v2220 = vadd.f32 %v2198, %v2202
      %v2221 = vsel %vm2038, %v2217, %v2219
      %v2222 = vsel %vm2038, %v2218, %v2220
      %v2223 = vmul.f32 %v2197, %v1959
      %v2224 = vmul.f32 %v2198, %v1961
      %v2225 = vmul.f32 %v2199, %v1888
      %v2226 = vmul.f32 %v2200, %v1890
      %v2227 = vadd.f32 %v2223, %v2225
      %v2228 = vadd.f32 %v2224, %v2226
      %v2229 = vadd.f32 %v2197, %v2199
      %v2230 = vadd.f32 %v2198, %v2200
      %v2231 = vsel %vm2038, %v2227, %v2229
      %v2232 = vsel %vm2038, %v2228, %v2230
      %v2233 = vld [vmem:[#allocation2] sm:$0xff]
      %2234 = vmatprep.subr.mxu0 %v1467
      %2235 = vmatpush1.msra.mxu0 %v1466
      %2236 = vmatprep.subr.mxu0 %v1469
      %2237 = vmatpush1.msra.mxu0 %v1468
      %2238 = vmatprep.subr.mxu0 %v1471
      %2239 = vmatpush1.msra.mxu0 %v1470
      %2240 = vmatprep.subr.mxu0 %v1473
      %2241 = vmatpush1.msra.mxu0 %v1472
      %2242 = vmatprep.subr.mxu0 %v1475
      %2243 = vmatpush1.msra.mxu0 %v1474
      %2244 = vmatprep.subr.mxu0 %v1477
      %2245 = vmatpush1.msra.mxu0 %v1476
      %2246 = vmatprep.subr.mxu0 %v1479
      %2247 = vmatpush1.msra.mxu0 %v1478
      %2248 = vmatprep.subr.mxu0 %v1481
      %2249 = vmatpush1.msra.mxu0 %v1480
      %2250 = vmatprep.subr.mxu0 %v1483
      %2251 = vmatpush1.msra.mxu0 %v1482
      %2252 = vmatprep.subr.mxu0 %v1485
      %2253 = vmatpush1.msra.mxu0 %v1484
      %2254 = vmatprep.subr.mxu0 %v1487
      %2255 = vmatpush1.msra.mxu0 %v1486
      %2256 = vmatprep.subr.mxu0 %v1489
      %2257 = vmatpush1.msra.mxu0 %v1488
      %2258 = vmatprep.subr.mxu0 %v1491
      %2259 = vmatpush1.msra.mxu0 %v1490
      %2260 = vmatprep.subr.mxu0 %v1493
      %2261 = vmatpush1.msra.mxu0 %v1492
      %2262 = vmatprep.subr.mxu0 %v1495
      %2263 = vmatpush1.msra.mxu0 %v1494
      %2264 = vmatprep.subr.mxu0 %v1497
      %2265 = vmatpush1.msra.mxu0 %v1496
      %2266 = vmatprep.subr.mxu0 %v1499
      %2267 = vmatpush1.msra.mxu0 %v1498
      %2268 = vmatprep.subr.mxu0 %v1501
      %2269 = vmatpush1.msra.mxu0 %v1500
      %2270 = vmatprep.subr.mxu0 %v1503
      %2271 = vmatpush1.msra.mxu0 %v1502
      %2272 = vmatprep.subr.mxu0 %v1505
      %2273 = vmatpush1.msra.mxu0 %v1504
      %2274 = vmatprep.subr.mxu0 %v1507
      %2275 = vmatpush1.msra.mxu0 %v1506
      %2276 = vmatprep.subr.mxu0 %v1509
      %2277 = vmatpush1.msra.mxu0 %v1508
      %2278 = vmatprep.subr.mxu0 %v1511
      %2279 = vmatpush1.msra.mxu0 %v1510
      %2280 = vmatprep.subr.mxu0 %v1513
      %2281 = vmatpush1.msra.mxu0 %v1512
      %2282 = vmatprep.subr.mxu0 %v1515
      %2283 = vmatpush1.msra.mxu0 %v1514
      %2284 = vmatprep.subr.mxu0 %v1517
      %2285 = vmatpush1.msra.mxu0 %v1516
      %2286 = vmatprep.subr.mxu0 %v1519
      %2287 = vmatpush1.msra.mxu0 %v1518
      %2288 = vmatprep.subr.mxu0 %v1521
      %2289 = vmatpush1.msra.mxu0 %v1520
      %2290 = vmatprep.subr.mxu0 %v1523
      %2291 = vmatpush1.msra.mxu0 %v1522
      %2292 = vmatprep.subr.mxu0 %v1525
      %2293 = vmatpush1.msra.mxu0 %v1524
      %2294 = vmatprep.subr.mxu0 %v1527
      %2295 = vmatpush1.msra.mxu0 %v1526
      %2296 = vmatprep.subr.mxu0 %v1529
      %2297 = vmatpush1.msra.mxu0 %v1528
      %2298 = vmatprep.mubr.f32.mxu0 %v2222
      %2299 = vmatmul.mubr.f32.gmra.mrb[0].mxu0 %v2221
      %v2300 = vpop.f32.mrb[0].mxu0
      %v2301 = vadd.f32 0.0, %v2300
      %v2302 = vpop.f32.mrb[0].mxu0
      %v2303 = vadd.f32 0.0, %v2302
      %2304 = vdwg.mxu0
      %2305 = vmatprep.subr.mxu0 %v1179
      %2306 = vmatpush1.msra.mxu0 %v1178
      %2307 = vmatprep.subr.mxu0 %v1181
      %2308 = vmatpush1.msra.mxu0 %v1180
      %2309 = vmatprep.subr.mxu0 %v1183
      %2310 = vmatpush1.msra.mxu0 %v1182
      %2311 = vmatprep.subr.mxu0 %v1185
      %2312 = vmatpush1.msra.mxu0 %v1184
      %2313 = vmatprep.subr.mxu0 %v1187
      %2314 = vmatpush1.msra.mxu0 %v1186
      %2315 = vmatprep.subr.mxu0 %v1189
      %2316 = vmatpush1.msra.mxu0 %v1188
      %2317 = vmatprep.subr.mxu0 %v1191
      %2318 = vmatpush1.msra.mxu0 %v1190
      %2319 = vmatprep.subr.mxu0 %v1193
      %2320 = vmatpush1.msra.mxu0 %v1192
      %2321 = vmatprep.subr.mxu0 %v1195
      %2322 = vmatpush1.msra.mxu0 %v1194
      %2323 = vmatprep.subr.mxu0 %v1197
      %2324 = vmatpush1.msra.mxu0 %v1196
      %2325 = vmatprep.subr.mxu0 %v1199
      %2326 = vmatpush1.msra.mxu0 %v1198
      %2327 = vmatprep.subr.mxu0 %v1201
      %2328 = vmatpush1.msra.mxu0 %v1200
      %2329 = vmatprep.subr.mxu0 %v1203
      %2330 = vmatpush1.msra.mxu0 %v1202
      %2331 = vmatprep.subr.mxu0 %v1205
      %2332 = vmatpush1.msra.mxu0 %v1204
      %2333 = vmatprep.subr.mxu0 %v1207
      %2334 = vmatpush1.msra.mxu0 %v1206
      %2335 = vmatprep.subr.mxu0 %v1209
      %2336 = vmatpush1.msra.mxu0 %v1208
      %2337 = vmatprep.subr.mxu0 %v1211
      %2338 = vmatpush1.msra.mxu0 %v1210
      %2339 = vmatprep.subr.mxu0 %v1213
      %2340 = vmatpush1.msra.mxu0 %v1212
      %2341 = vmatprep.subr.mxu0 %v1215
      %2342 = vmatpush1.msra.mxu0 %v1214
      %2343 = vmatprep.subr.mxu0 %v1217
      %2344 = vmatpush1.msra.mxu0 %v1216
      %2345 = vmatprep.subr.mxu0 %v1219
      %2346 = vmatpush1.msra.mxu0 %v1218
      %2347 = vmatprep.subr.mxu0 %v1221
      %2348 = vmatpush1.msra.mxu0 %v1220
      %2349 = vmatprep.subr.mxu0 %v1223
      %2350 = vmatpush1.msra.mxu0 %v1222
      %2351 = vmatprep.subr.mxu0 %v1225
      %2352 = vmatpush1.msra.mxu0 %v1224
      %2353 = vmatprep.subr.mxu0 %v1227
      %2354 = vmatpush1.msra.mxu0 %v1226
      %2355 = vmatprep.subr.mxu0 %v1229
      %2356 = vmatpush1.msra.mxu0 %v1228
      %2357 = vmatprep.subr.mxu0 %v1231
      %2358 = vmatpush1.msra.mxu0 %v1230
      %2359 = vmatprep.subr.mxu0 %v1233
      %2360 = vmatpush1.msra.mxu0 %v1232
      %2361 = vmatprep.subr.mxu0 %v1235
      %2362 = vmatpush1.msra.mxu0 %v1234
      %2363 = vmatprep.subr.mxu0 %v1237
      %2364 = vmatpush1.msra.mxu0 %v1236
      %2365 = vmatprep.subr.mxu0 %v1239
      %2366 = vmatpush1.msra.mxu0 %v1238
      %2367 = vmatprep.subr.mxu0 %v1241
      %2368 = vmatpush1.msra.mxu0 %v1240
      %2369 = vmatprep.mubr.f32.mxu0 %v2212
      %2370 = vmatmul.mubr.f32.gmra.mrb[0].mxu0 %v2211
      %v2371 = vpop.f32.mrb[0].mxu0
      %v2372 = vadd.f32 %v2301, %v2371
      %v2373 = vpop.f32.mrb[0].mxu0
      %v2374 = vadd.f32 %v2303, %v2373
      %2375 = vdwg.mxu0
      %2376 = vmatprep.subr.mxu0 %v1755
      %2377 = vmatpush1.msra.mxu0 %v1754
      %2378 = vmatprep.subr.mxu0 %v1757
      %2379 = vmatpush1.msra.mxu0 %v1756
      %2380 = vmatprep.subr.mxu0 %v1759
      %2381 = vmatpush1.msra.mxu0 %v1758
      %2382 = vmatprep.subr.mxu0 %v1761
      %2383 = vmatpush1.msra.mxu0 %v1760
      %2384 = vmatprep.subr.mxu0 %v1763
      %2385 = vmatpush1.msra.mxu0 %v1762
      %2386 = vmatprep.subr.mxu0 %v1765
      %2387 = vmatpush1.msra.mxu0 %v1764
      %2388 = vmatprep.subr.mxu0 %v1767
      %2389 = vmatpush1.msra.mxu0 %v1766
      %2390 = vmatprep.subr.mxu0 %v1769
      %2391 = vmatpush1.msra.mxu0 %v1768
      %2392 = vmatprep.subr.mxu0 %v1771
      %2393 = vmatpush1.msra.mxu0 %v1770
      %2394 = vmatprep.subr.mxu0 %v1773
      %2395 = vmatpush1.msra.mxu0 %v1772
      %2396 = vmatprep.subr.mxu0 %v1775
      %2397 = vmatpush1.msra.mxu0 %v1774
      %2398 = vmatprep.subr.mxu0 %v1777
      %2399 = vmatpush1.msra.mxu0 %v1776
      %2400 = vmatprep.subr.mxu0 %v1779
      %2401 = vmatpush1.msra.mxu0 %v1778
      %2402 = vmatprep.subr.mxu0 %v1781
      %2403 = vmatpush1.msra.mxu0 %v1780
      %2404 = vmatprep.subr.mxu0 %v1783
      %2405 = vmatpush1.msra.mxu0 %v1782
      %2406 = vmatprep.subr.mxu0 %v1785
      %2407 = vmatpush1.msra.mxu0 %v1784
      %2408 = vmatprep.subr.mxu0 %v1787
      %2409 = vmatpush1.msra.mxu0 %v1786
      %2410 = vmatprep.subr.mxu0 %v1789
      %2411 = vmatpush1.msra.mxu0 %v1788
      %2412 = vmatprep.subr.mxu0 %v1791
      %2413 = vmatpush1.msra.mxu0 %v1790
      %2414 = vmatprep.subr.mxu0 %v1793
      %2415 = vmatpush1.msra.mxu0 %v1792
      %2416 = vmatprep.subr.mxu0 %v1795
      %2417 = vmatpush1.msra.mxu0 %v1794
      %2418 = vmatprep.subr.mxu0 %v1797
      %2419 = vmatpush1.msra.mxu0 %v1796
      %2420 = vmatprep.subr.mxu0 %v1799
      %2421 = vmatpush1.msra.mxu0 %v1798
      %2422 = vmatprep.subr.mxu0 %v1801
      %2423 = vmatpush1.msra.mxu0 %v1800
      %2424 = vmatprep.subr.mxu0 %v1803
      %2425 = vmatpush1.msra.mxu0 %v1802
      %2426 = vmatprep.subr.mxu0 %v1805
      %2427 = vmatpush1.msra.mxu0 %v1804
      %2428 = vmatprep.subr.mxu0 %v1807
      %2429 = vmatpush1.msra.mxu0 %v1806
      %2430 = vmatprep.subr.mxu0 %v1809
      %2431 = vmatpush1.msra.mxu0 %v1808
      %2432 = vmatprep.subr.mxu0 %v1811
      %2433 = vmatpush1.msra.mxu0 %v1810
      %2434 = vmatprep.subr.mxu0 %v1813
      %2435 = vmatpush1.msra.mxu0 %v1812
      %2436 = vmatprep.subr.mxu0 %v1815
      %2437 = vmatpush1.msra.mxu0 %v1814
      %2438 = vmatprep.subr.mxu0 %v1817
      %2439 = vmatpush1.msra.mxu0 %v1816
      %2440 = vmatprep.mubr.f32.mxu0 %v2232
      %2441 = vmatmul.mubr.f32.gmra.mrb[0].mxu0 %v2231
      %v2442 = vpop.f32.mrb[0].mxu0
      %v2443 = vadd.f32 0.0, %v2442
      %v2444 = vpop.f32.mrb[0].mxu0
      %v2445 = vadd.f32 0.0, %v2444
      %2446 = vdwg.mxu0
      %v2447 = vadd.f32 %v2372, %v2443
      %v2448 = vadd.f32 %v2374, %v2445
      %v2451 = vcombine.low %v2447, %v2448
      %v2453 = vadd.f32 %v2233, %v2451
      %2454 = vst [vmem:[#allocation2] sm:$0xff] %v2453
      %p2455 = scmp.eq.s32.totalorder %s19, 1
      // Predicated region
      $region37: #{tpu_custom_call.1} parent=31 // pred_check
        %p2456 = pneg %p2455
      $region38: #{tpu_custom_call.1} parent=31 // pred_check_branch
        %2458 = sbr.rel (%p2456) target = $region40
      $region39: #{tpu_custom_call.1} parent=31 // pred_region
        %v2459 = vld [vmem:[#allocation2] sm:$0xff]
        %v2461 = vlaneseq
        %v2462 = vshrl.u32 %v2461, 7
        %v2463 = vsub.s32 3, %v2462
        %v2464 = vrot.slane %v2459, %v2463
        %v2465 = vlaneseq
        %v2466 = vshrl.u32 %v2465, 7
        %v2467 = vsub.s32 7, %v2466
        %v2468 = vrot.slane %v2459, %v2467
        %v2471 = vlaneseq
        %v2472 = vshrl.u32 %v2471, 7
        %v2473 = vsub.s32 3, %v2472
        %v2474 = vrot.slane %v2464, %v2473
        %v2475 = vlaneseq
        %v2476 = vshrl.u32 %v2475, 7
        %v2477 = vsub.s32 3, %v2476
        %v2478 = vrot.slane %v2468, %v2477
        %v2479 = vmul.f32 %v2474, %v293
        %v2480 = vmul.f32 %v2478, %v1819
        %v2481 = vcombine.high %v2459, %v2459
        %v2483 = vsub.f32 %v2479, %v2459
        %v2484 = vsub.f32 %v2480, %v2481
        %v2487 = vcombine.low %v2483, %v2484
        %2489 = vst [vmem:[%s254] sm:$0x77] %v2487
      $region40: #{tpu_custom_call.1} parent=31 // pred_fallthru
        _
      %p2490 = scmp.lt.s32.totalorder %s18, 1
      %s2491 = scalar_select %p2490, %s18, 1
      %s2492 = smul.addr %s2491, 2
      %s2493 = smul.addr %s2492, 4
      %s2494 = scalar_lea.vmem %s3, %s2493
      // Predicated region
      $region41: #{tpu_custom_call.1} parent=31 // pred_check
        %p2495 = pneg %p126
      $region42: #{tpu_custom_call.1} parent=31 // pred_check_branch
        %2497 = sbr.rel (%p2495) target = $region44
      $region43: #{tpu_custom_call.1} parent=31 // pred_region
        _
      $region44: #{tpu_custom_call.1} parent=31 // pred_fallthru
        _
    $region32: #{tpu_custom_call.1} parent=5 // pred_fallthru
      _
    %p2498 = scmp.le.s32.totalorder 2, %s9
    // Predicated region
    $region45: #{tpu_custom_call.1} parent=5 // pred_check
      %p2499 = pneg %p2498
    $region46: #{tpu_custom_call.1} parent=5 // pred_check_branch
      %2501 = sbr.rel (%p2499) target = $region48
    $region47: #{tpu_custom_call.1} parent=5 // pred_region
      %s2502 = ssub.s32 %s9, 2
      // Predicated region
      $region49: #{tpu_custom_call.1} parent=47 // pred_check
        %p2503 = pneg %p132
      $region50: #{tpu_custom_call.1} parent=47 // pred_check_branch
        %2505 = sbr.rel (%p2503) target = $region52
      $region51: #{tpu_custom_call.1} parent=47 // pred_region
        %p2506 = scmp.lt.s32.totalorder %s20, 1
        %s2507 = scalar_select %p2506, %s20, 1
        %s2508 = smul.addr %s2507, 2
        %s2509 = smul.addr %s2508, 4
        %s2510 = scalar_lea.vmem %s3, %s2509
      $region52: #{tpu_custom_call.1} parent=47 // pred_fallthru
        _
    $region48: #{tpu_custom_call.1} parent=5 // pred_fallthru
      _
  $region6: #{tpu_custom_call.1} parent=0 // loop_footer
    %s13 = sadd.s32 1, %s9
  $region7: #{tpu_custom_call.1} parent=0 // loop_footer_branch
    %8 = sbr.rel target = $region3
  $region8: #{tpu_custom_call.1} parent=0 // loop_exit
    _

</llo_original>
